<compile_context>
chip_gen: v5e
topology: v5e:2x2
jax: 0.10.0
libtpu: 0.0.40
codegen_flags: <defaults>
</compile_context>

<pallas_src>
import functools

import jax
import jax.numpy as jnp
from jax import lax
from jax.experimental import pallas as pl
from jax.experimental.pallas import tpu as pltpu


def _round_up(x: int, m: int) -> int:
    return (x + m - 1) // m * m


# ----------------------------------------------------------------------------
# Fused kernel: per time block
#   1) gates_x = x_block @ W_ih + bias          (one MXU matmul into VMEM)
#   2) serial LSTM steps:  g = gates_x[t] + h @ W_hh ; gate math on VPU/EUP
#   3) at the last time block: last-step Linear head (VPU mul + lane reduce)
# h/c persist across grid steps in VMEM scratch (re-initialised at the first
# time block of every batch block).
# ----------------------------------------------------------------------------
def _fused_lstm_kernel(x_ref, wih_ref, whh_ref, b_ref, wout_ref, bout_ref,
                       out_ref, gates_sc, h_sc, c_sc,
                       *, hidden_padded, block_b, block_t, seq_len, unroll):
    Hp = hidden_padded
    tb = pl.program_id(1)                      # time-block index (inner axis)

    @pl.when(tb == 0)
    def _():
        # h0 = None in the reference forward -> zero initial state.
        h_sc[...] = jnp.zeros_like(h_sc)
        c_sc[...] = jnp.zeros_like(c_sc)

    # Hoisted input projection for the whole time block: a single MXU matmul
    # with M = block_t * block_b rows; bias folded in here.  Never leaves VMEM.
    gates_sc[...] = (
        jnp.dot(x_ref[...], wih_ref[...], preferred_element_type=jnp.float32)
        + b_ref[...])

    needs_mask = (seq_len % block_t) != 0      # only ragged final block

    def step(tt, carry):
        h, c = carry
        row0 = pl.multiple_of(tt * block_b, block_b)     # sublane-aligned
        whh = whh_ref[...]
        g = gates_sc[pl.ds(row0, block_b), :] + jnp.dot(
            h.astype(whh.dtype), whh, preferred_element_type=jnp.float32)
        # Gate columns pre-reordered host-side to [i, f, o, g]:
        # one sigmoid over the contiguous first 3*Hp lanes, one tanh over the
        # last Hp lanes (critical-path EUP pushes: 2 + tanh(c) vs 4 + 1).
        s = jax.nn.sigmoid(g[:, : 3 * Hp])
        g_g = jnp.tanh(g[:, 3 * Hp:])
        i_g = s[:, 0 * Hp:1 * Hp]
        f_g = s[:, 1 * Hp:2 * Hp]
        o_g = s[:, 2 * Hp:3 * Hp]

        c_new = f_g * c + i_g * g_g
        h_new = o_g * jnp.tanh(c_new)

        if needs_mask:
            # Padded timesteps: keep state unchanged (select, NOT arithmetic
            # masking, so unspecified padded-gate values are simply discarded).
            valid = (tb * block_t + tt) < seq_len
            h_new = jnp.where(valid, h_new, h)
            c_new = jnp.where(valid, c_new, c)
        return h_new, c_new

    h, c = lax.fori_loop(0, block_t, step, (h_sc[...], c_sc[...]),
                         unroll=unroll)
    h_sc[...] = h
    c_sc[...] = c

    @pl.when(tb == pl.num_programs(1) - 1)
    def _():
        # x = x[:, -1, :]  ->  Linear(H, 1): VPU multiply + lane reduction
        # (no wasteful 1-column MXU matmul).  Padded H lanes contribute 0.
        out_ref[...] = (jnp.sum(h * wout_ref[...], axis=-1, keepdims=True)
                        + bout_ref[...]).astype(out_ref.dtype)


# ----------------------------------------------------------------------------
# Host-side parameter preparation (one-time): bf16 at rest, gate reorder
# [i,f,g,o] -> [i,f,o,g], zero-pad H to a multiple of 128 lanes.
# ----------------------------------------------------------------------------
def _reorder_gate_cols_ifog(w, H, Hp):
    i, f, g, o = jnp.split(w, 4, axis=-1)
    pad = [(0, 0)] * (w.ndim - 1) + [(0, Hp - H)]
    return jnp.concatenate([jnp.pad(blk, pad) for blk in (i, f, o, g)], axis=-1)


def prepare_params(params, *, matmul_dtype=jnp.bfloat16, lane=128):
    H = params["w_hh"].shape[0]
    Hp = _round_up(H, lane)
    w_ih = _reorder_gate_cols_ifog(params["w_ih"], H, Hp)          # (E, 4Hp)
    w_hh = _reorder_gate_cols_ifog(params["w_hh"], H, Hp)          # (H, 4Hp)
    w_hh = jnp.pad(w_hh, ((0, Hp - H), (0, 0)))                    # (Hp, 4Hp)
    bias = _reorder_gate_cols_ifog(params["bias"], H, Hp)          # (1, 4Hp)
    w_out = jnp.pad(params["w_out"].reshape(1, H), ((0, 0), (0, Hp - H)))
    return {
        "emb": params["emb"].astype(matmul_dtype),   # bf16 at rest: halves gather bytes
        "w_ih": w_ih.astype(matmul_dtype),
        "w_hh": w_hh.astype(matmul_dtype),
        "bias": bias.astype(jnp.float32),            # gate math stays f32 (v5e VPU)
        "w_out": w_out.astype(jnp.float32),
        "b_out": params["b_out"].astype(jnp.float32),
    }


def sequence_tagging_forward(token_ids, prep, *, block_t=32, block_b=None):
    """token_ids: (B, T) int32.  prep: prepare_params(...).  Returns squeezed logits."""
    emb, w_ih, w_hh = prep["emb"], prep["w_ih"], prep["w_hh"]
    bias, w_out, b_out = prep["bias"], prep["w_out"], prep["b_out"]

    B, T = token_ids.shape
    E = emb.shape[1]
    Hp = w_hh.shape[0]                          # lane-padded hidden size

    Bp = _round_up(B, 8)                        # sublane-pad batch
    if block_b is None:
        # Two independent batch blocks when batch is big enough -> leading
        # "parallel" axis can be split across v7x's two TensorCores.
        block_b = Bp // 2 if (Bp >= 16 and (Bp // 2) % 8 == 0) else Bp
    n_b = Bp // block_b
    tb_size = min(block_t, T)
    Tp = _round_up(T, tb_size)
    n_t = Tp // tb_size

    # Pad ids (id 0 == padding_idx -> zero embedding rows) and gather bf16
    # embeddings directly in [batch-block, time, in-block-batch] order, so no
    # (B,T,E) activation transpose is materialized in HBM and every kernel x
    # block is a contiguous 2-D (block_t*block_b, E) slab.
    ids = jnp.pad(token_ids.astype(jnp.int32), ((0, Bp - B), (0, Tp - T)))
    ids = ids.reshape(n_b, block_b, Tp).transpose(0, 2, 1)       # (n_b, Tp, block_b)
    x = jnp.take(emb, ids, axis=0).reshape(n_b, Tp * block_b, E)  # bf16

    kernel = functools.partial(
        _fused_lstm_kernel, hidden_padded=Hp, block_b=block_b,
        block_t=tb_size, seq_len=T, unroll=min(8, tb_size))

    # Advisory cost estimate for XLA scheduling around the custom call.
    flops = 2 * Tp * Bp * 4 * Hp * (E + Hp) + 2 * Bp * Hp
    transcendentals = Tp * Bp * 5 * Hp
    bytes_accessed = (Tp * Bp * E * 2 + (E + Hp) * 4 * Hp * 2
                      + (4 * Hp + Hp + 1) * 4 + Bp * 4)

    # VMEM budget: double-buffered x block + (conservatively 2x) weights +
    # gates/h/c scratch, with headroom.  Keeps us well inside v7x's 64 MiB.
    xb = 2 * tb_size * block_b * E * 2
    wb = 2 * ((E + Hp) * 4 * Hp * 2 + (4 * Hp + Hp + 1) * 4)
    scr = tb_size * block_b * 4 * Hp * 4 + 2 * block_b * Hp * 4
    vmem_limit = min(max(int(1.5 * (xb + wb + scr)) + (2 << 20), 16 << 20),
                     64 << 20)

    out = pl.pallas_call(
        kernel,
        out_shape=jax.ShapeDtypeStruct((Bp, 1), jnp.float32),
        grid_spec=pltpu.PrefetchScalarGridSpec(
            num_scalar_prefetch=0,
            grid=(n_b, n_t),                     # batch blocks outer, time inner
            in_specs=[
                pl.BlockSpec((None, tb_size * block_b, E),
                             lambda bb, tb: (bb, tb, 0)),          # x block
                pl.BlockSpec((E, 4 * Hp), lambda bb, tb: (0, 0)),  # W_ih (resident)
                pl.BlockSpec((Hp, 4 * Hp), lambda bb, tb: (0, 0)), # W_hh (resident)
                pl.BlockSpec((1, 4 * Hp), lambda bb, tb: (0, 0)),  # bias (f32)
                pl.BlockSpec((1, Hp), lambda bb, tb: (0, 0)),      # w_out row
                pl.BlockSpec((1, 1), lambda bb, tb: (0, 0)),       # b_out
            ],
            out_specs=pl.BlockSpec((block_b, 1), lambda bb, tb: (bb, 0)),
            scratch_shapes=[
                pltpu.VMEM((tb_size * block_b, 4 * Hp), jnp.float32),  # gates
                pltpu.VMEM((block_b, Hp), jnp.float32),                # h state
                pltpu.VMEM((block_b, Hp), jnp.float32),                # c state
            ],
        ),
        compiler_params=pltpu.CompilerParams(
            dimension_semantics=("parallel", "arbitrary"),
            vmem_limit_bytes=vmem_limit,
        ),
        cost_estimate=pl.CostEstimate(flops=flops,
                                      transcendentals=transcendentals,
                                      bytes_accessed=bytes_accessed),
    )(x, w_ih, w_hh, bias, w_out, b_out)

    # l is None path: last timestep, Linear, then .squeeze() (drop batch pad).
    return jnp.squeeze(out[:B, :])


def init_params(key, num_embeddings, embedding_dim, hidden_size):
    """Deterministic synthetic parameters, PyTorch layout ([i,f,g,o] gates)."""
    ks = jax.random.split(key, 7)
    scale = 1.0 / jnp.sqrt(hidden_size)

    emb = jax.random.normal(ks[0], (num_embeddings, embedding_dim), jnp.float32)
    emb = emb.at[0].set(0.0)             # padding_idx=0

    w_ih = jax.random.uniform(ks[1], (embedding_dim, 4 * hidden_size),
                              jnp.float32, -scale, scale)
    w_hh = jax.random.uniform(ks[2], (hidden_size, 4 * hidden_size),
                              jnp.float32, -scale, scale)
    b_ih = jax.random.uniform(ks[3], (1, 4 * hidden_size),
                              jnp.float32, -scale, scale)
    b_hh = jax.random.uniform(ks[4], (1, 4 * hidden_size),
                              jnp.float32, -scale, scale)
    w_out = jax.random.uniform(ks[5], (hidden_size, 1),
                               jnp.float32, -scale, scale)
    b_out = jax.random.uniform(ks[6], (1, 1), jnp.float32, -scale, scale)

    return {"emb": emb, "w_ih": w_ih, "w_hh": w_hh,
            "bias": b_ih + b_hh, "w_out": w_out, "b_out": b_out}


def _ref_forward(token_ids, params, *, matmul_dtype=jnp.bfloat16):
    """Pure-JAX reference (PyTorch forward, h0=None, l=None), PyTorch gate
    order, same matmul-operand dtype as the kernel."""
    emb = params["emb"].astype(matmul_dtype)
    x = jnp.take(emb, token_ids, axis=0)                 # (B, T, E) bf16
    B, T, _ = x.shape
    H = params["w_hh"].shape[0]
    w_ih = params["w_ih"].astype(matmul_dtype)
    w_hh = params["w_hh"].astype(matmul_dtype)
    h = jnp.zeros((B, H), jnp.float32)
    c = jnp.zeros((B, H), jnp.float32)
    for t in range(T):
        gx = jnp.dot(x[:, t, :], w_ih,
                     preferred_element_type=jnp.float32) + params["bias"]
        g = gx + jnp.dot(h.astype(matmul_dtype), w_hh,
                         preferred_element_type=jnp.float32)
        i = jax.nn.sigmoid(g[:, 0 * H:1 * H])
        f = jax.nn.sigmoid(g[:, 1 * H:2 * H])
        gg = jnp.tanh(g[:, 2 * H:3 * H])
        o = jax.nn.sigmoid(g[:, 3 * H:4 * H])
        c = f * c + i * gg
        h = o * jnp.tanh(c)
    logits = (jnp.sum(h * params["w_out"].reshape(1, H), axis=-1, keepdims=True)
              + params["b_out"])
    return jnp.squeeze(logits)


if __name__ == "__main__":
    B, T = 2, 8
    NUM_EMB, E, H = 100, 32, 32

    key = jax.random.PRNGKey(0)
    k_ids, k_params = jax.random.split(key)

    params = init_params(k_params, NUM_EMB, E, H)
    prep = prepare_params(params)
    token_ids = jax.random.randint(k_ids, (B, T), 0, NUM_EMB, dtype=jnp.int32)

    fwd = jax.jit(functools.partial(sequence_tagging_forward, block_t=32))
    out = jax.block_until_ready(fwd(token_ids, prep))
    ref = jax.block_until_ready(_ref_forward(token_ids, params))

    assert out.shape == (B,), out.shape
    assert jnp.allclose(out, ref, atol=1e-3, rtol=1e-3), (out, ref)
    print("KERNEL_OK")
</pallas_src>

<mosaic_0001>
module attributes {stable_mosaic.version = 11 : i64} {
  func.func @_fused_lstm_kernel(%arg0: i32, %arg1: i32, %arg2: memref<1x64x32xbf16, #tpu.memory_space<vmem>>, %arg3: memref<32x512xbf16, #tpu.memory_space<vmem>>, %arg4: memref<128x512xbf16, #tpu.memory_space<vmem>>, %arg5: memref<1x512xf32, #tpu.memory_space<vmem>>, %arg6: memref<1x128xf32, #tpu.memory_space<vmem>>, %arg7: memref<1x1xf32, #tpu.memory_space<vmem>>, %arg8: memref<8x1xf32, #tpu.memory_space<vmem>>, %arg9: memref<64x512xf32, #tpu.memory_space<vmem>>, %arg10: memref<8x128xf32, #tpu.memory_space<vmem>>, %arg11: memref<8x128xf32, #tpu.memory_space<vmem>>) attributes {dimension_semantics = [#tpu.dimension_semantics<parallel>, #tpu.dimension_semantics<arbitrary>], iteration_bounds = array<i64: 1, 1>, scalar_prefetch = 0 : i64, scratch_operands = 3 : i64, tpu.core_type = #tpu.core_type<tc>, window_params = [{transform_indices = @transform_0, window_bounds = array<i64: 1, 64, 32>}, {pipeline_mode = #tpu.pipeline_mode<synchronous>, transform_indices = @transform_1, window_bounds = array<i64: 32, 512>}, {pipeline_mode = #tpu.pipeline_mode<synchronous>, transform_indices = @transform_2, window_bounds = array<i64: 128, 512>}, {pipeline_mode = #tpu.pipeline_mode<synchronous>, transform_indices = @transform_3, window_bounds = array<i64: 1, 512>}, {pipeline_mode = #tpu.pipeline_mode<synchronous>, transform_indices = @transform_4, window_bounds = array<i64: 1, 128>}, {pipeline_mode = #tpu.pipeline_mode<synchronous>, transform_indices = @transform_5, window_bounds = array<i64: 1, 1>}, {transform_indices = @transform_6, window_bounds = array<i64: 8, 1>}]} {
    %c0_i32 = arith.constant 0 : i32
    %0 = arith.cmpi eq, %arg1, %c0_i32 : i32
    %1 = arith.extui %0 : i1 to i32
    %c0_i32_0 = arith.constant 0 : i32
    %2 = arith.cmpi ne, %1, %c0_i32_0 : i32
    scf.if %2 {
      %cst_68 = arith.constant 0.000000e+00 : f32
      %210 = vector.broadcast %cst_68 : f32 to vector<8x128xf32>
      %c0_69 = arith.constant 0 : index
      %c0_70 = arith.constant 0 : index
      %211 = vector.load %arg10[%c0_69, %c0_70] : memref<8x128xf32, #tpu.memory_space<vmem>>, vector<8x128xf32>
      tpu.vector_store %arg10[%c0_69, %c0_70], %210 {strides = array<i32>} : memref<8x128xf32, #tpu.memory_space<vmem>>, vector<8x128xf32>,
      %cst_71 = arith.constant 0.000000e+00 : f32
      %212 = vector.broadcast %cst_71 : f32 to vector<8x128xf32>
      %c0_72 = arith.constant 0 : index
      %c0_73 = arith.constant 0 : index
      %213 = vector.load %arg11[%c0_72, %c0_73] : memref<8x128xf32, #tpu.memory_space<vmem>>, vector<8x128xf32>
      tpu.vector_store %arg11[%c0_72, %c0_73], %212 {strides = array<i32>} : memref<8x128xf32, #tpu.memory_space<vmem>>, vector<8x128xf32>,
    } else {
    }
    %c0 = arith.constant 0 : index
    %c0_1 = arith.constant 0 : index
    %c0_2 = arith.constant 0 : index
    %3 = vector.load %arg2[%c0, %c0_1, %c0_2] : memref<1x64x32xbf16, #tpu.memory_space<vmem>>, vector<1x64x32xbf16>
    %4 = vector.shape_cast %3 : vector<1x64x32xbf16> to vector<64x32xbf16>
    %c0_3 = arith.constant 0 : index
    %c0_4 = arith.constant 0 : index
    %5 = vector.load %arg3[%c0_3, %c0_4] : memref<32x512xbf16, #tpu.memory_space<vmem>>, vector<32x512xbf16>
    %cst = arith.constant dense<0.000000e+00> : vector<64x512xf32>
    %6 = tpu.matmul %4, %5, %cst {dimension_numbers = #tpu.dot_dimension_numbers<[1], [0], [0], [1], [0, 0, 1, 1], [], []>} : vector<64x32xbf16>, vector<32x512xbf16>, vector<64x512xf32> -> vector<64x512xf32>
    %c0_5 = arith.constant 0 : index
    %c0_6 = arith.constant 0 : index
    %7 = vector.load %arg5[%c0_5, %c0_6] : memref<1x512xf32, #tpu.memory_space<vmem>>, vector<1x512xf32>
    %8 = vector.broadcast %7 : vector<1x512xf32> to vector<64x512xf32>
    %9 = arith.addf %6, %8 : vector<64x512xf32>
    %c0_7 = arith.constant 0 : index
    %c0_8 = arith.constant 0 : index
    %10 = vector.load %arg9[%c0_7, %c0_8] : memref<64x512xf32, #tpu.memory_space<vmem>>, vector<64x512xf32>
    tpu.vector_store %arg9[%c0_7, %c0_8], %9 {strides = array<i32>} : memref<64x512xf32, #tpu.memory_space<vmem>>, vector<64x512xf32>,
    %c0_9 = arith.constant 0 : index
    %c0_10 = arith.constant 0 : index
    %11 = vector.load %arg10[%c0_9, %c0_10] : memref<8x128xf32, #tpu.memory_space<vmem>>, vector<8x128xf32>
    %c0_11 = arith.constant 0 : index
    %c0_12 = arith.constant 0 : index
    %12 = vector.load %arg11[%c0_11, %c0_12] : memref<8x128xf32, #tpu.memory_space<vmem>>, vector<8x128xf32>
    %c0_i32_13 = arith.constant 0 : i32
    %c8_i32 = arith.constant 8 : i32
    %13 = arith.muli %c0_i32_13, %c8_i32 : i32
    %14 = tpu.assume_multiple %13, 8 : i32
    %c0_14 = arith.constant 0 : index
    %c0_15 = arith.constant 0 : index
    %15 = vector.load %arg4[%c0_14, %c0_15] : memref<128x512xbf16, #tpu.memory_space<vmem>>, vector<128x512xbf16>
    %16 = arith.index_cast %14 : i32 to index
    %c0_16 = arith.constant 0 : index
    %17 = vector.load %arg9[%16, %c0_16] : memref<64x512xf32, #tpu.memory_space<vmem>>, vector<8x512xf32>
    %18 = arith.truncf %11 : vector<8x128xf32> to vector<8x128xbf16>
    %cst_17 = arith.constant dense<0.000000e+00> : vector<8x512xf32>
    %19 = tpu.matmul %18, %15, %cst_17 {dimension_numbers = #tpu.dot_dimension_numbers<[1], [0], [0], [1], [0, 0, 1, 1], [], []>} : vector<8x128xbf16>, vector<128x512xbf16>, vector<8x512xf32> -> vector<8x512xf32>
    %20 = arith.addf %17, %19 : vector<8x512xf32>
    %21 = vector.extract_strided_slice %20 {offsets = [0, 0], sizes = [8, 384], strides = [1, 1]} : vector<8x512xf32> to vector<8x384xf32>
    %22 = arith.negf %21 : vector<8x384xf32>
    %23 = math.exp %22 : vector<8x384xf32>
    %cst_18 = arith.constant 1.000000e+00 : f32
    %24 = vector.broadcast %cst_18 : f32 to vector<8x384xf32>
    %25 = arith.addf %24, %23 : vector<8x384xf32>
    %26 = arith.divf %24, %25 : vector<8x384xf32>
    %27 = vector.extract_strided_slice %20 {offsets = [0, 384], sizes = [8, 128], strides = [1, 1]} : vector<8x512xf32> to vector<8x128xf32>
    %28 = math.tanh %27 : vector<8x128xf32>
    %29 = vector.extract_strided_slice %26 {offsets = [0, 0], sizes = [8, 128], strides = [1, 1]} : vector<8x384xf32> to vector<8x128xf32>
    %30 = vector.extract_strided_slice %26 {offsets = [0, 128], sizes = [8, 128], strides = [1, 1]} : vector<8x384xf32> to vector<8x128xf32>
    %31 = vector.extract_strided_slice %26 {offsets = [0, 256], sizes = [8, 128], strides = [1, 1]} : vector<8x384xf32> to vector<8x128xf32>
    %32 = arith.mulf %30, %12 : vector<8x128xf32>
    %33 = arith.mulf %29, %28 : vector<8x128xf32>
    %34 = arith.addf %32, %33 : vector<8x128xf32>
    %35 = math.tanh %34 : vector<8x128xf32>
    %36 = arith.mulf %31, %35 : vector<8x128xf32>
    %c1_i32 = arith.constant 1 : i32
    %c8_i32_19 = arith.constant 8 : i32
    %37 = arith.muli %c1_i32, %c8_i32_19 : i32
    %38 = tpu.assume_multiple %37, 8 : i32
    %c0_20 = arith.constant 0 : index
    %c0_21 = arith.constant 0 : index
    %39 = vector.load %arg4[%c0_20, %c0_21] : memref<128x512xbf16, #tpu.memory_space<vmem>>, vector<128x512xbf16>
    %40 = arith.index_cast %38 : i32 to index
    %c0_22 = arith.constant 0 : index
    %41 = vector.load %arg9[%40, %c0_22] : memref<64x512xf32, #tpu.memory_space<vmem>>, vector<8x512xf32>
    %42 = arith.truncf %36 : vector<8x128xf32> to vector<8x128xbf16>
    %cst_23 = arith.constant dense<0.000000e+00> : vector<8x512xf32>
    %43 = tpu.matmul %42, %39, %cst_23 {dimension_numbers = #tpu.dot_dimension_numbers<[1], [0], [0], [1], [0, 0, 1, 1], [], []>} : vector<8x128xbf16>, vector<128x512xbf16>, vector<8x512xf32> -> vector<8x512xf32>
    %44 = arith.addf %41, %43 : vector<8x512xf32>
    %45 = vector.extract_strided_slice %44 {offsets = [0, 0], sizes = [8, 384], strides = [1, 1]} : vector<8x512xf32> to vector<8x384xf32>
    %46 = arith.negf %45 : vector<8x384xf32>
    %47 = math.exp %46 : vector<8x384xf32>
    %cst_24 = arith.constant 1.000000e+00 : f32
    %48 = vector.broadcast %cst_24 : f32 to vector<8x384xf32>
    %49 = arith.addf %48, %47 : vector<8x384xf32>
    %50 = arith.divf %48, %49 : vector<8x384xf32>
    %51 = vector.extract_strided_slice %44 {offsets = [0, 384], sizes = [8, 128], strides = [1, 1]} : vector<8x512xf32> to vector<8x128xf32>
    %52 = math.tanh %51 : vector<8x128xf32>
    %53 = vector.extract_strided_slice %50 {offsets = [0, 0], sizes = [8, 128], strides = [1, 1]} : vector<8x384xf32> to vector<8x128xf32>
    %54 = vector.extract_strided_slice %50 {offsets = [0, 128], sizes = [8, 128], strides = [1, 1]} : vector<8x384xf32> to vector<8x128xf32>
    %55 = vector.extract_strided_slice %50 {offsets = [0, 256], sizes = [8, 128], strides = [1, 1]} : vector<8x384xf32> to vector<8x128xf32>
    %56 = arith.mulf %54, %34 : vector<8x128xf32>
    %57 = arith.mulf %53, %52 : vector<8x128xf32>
    %58 = arith.addf %56, %57 : vector<8x128xf32>
    %59 = math.tanh %58 : vector<8x128xf32>
    %60 = arith.mulf %55, %59 : vector<8x128xf32>
    %c2_i32 = arith.constant 2 : i32
    %c8_i32_25 = arith.constant 8 : i32
    %61 = arith.muli %c2_i32, %c8_i32_25 : i32
    %62 = tpu.assume_multiple %61, 8 : i32
    %c0_26 = arith.constant 0 : index
    %c0_27 = arith.constant 0 : index
    %63 = vector.load %arg4[%c0_26, %c0_27] : memref<128x512xbf16, #tpu.memory_space<vmem>>, vector<128x512xbf16>
    %64 = arith.index_cast %62 : i32 to index
    %c0_28 = arith.constant 0 : index
    %65 = vector.load %arg9[%64, %c0_28] : memref<64x512xf32, #tpu.memory_space<vmem>>, vector<8x512xf32>
    %66 = arith.truncf %60 : vector<8x128xf32> to vector<8x128xbf16>
    %cst_29 = arith.constant dense<0.000000e+00> : vector<8x512xf32>
    %67 = tpu.matmul %66, %63, %cst_29 {dimension_numbers = #tpu.dot_dimension_numbers<[1], [0], [0], [1], [0, 0, 1, 1], [], []>} : vector<8x128xbf16>, vector<128x512xbf16>, vector<8x512xf32> -> vector<8x512xf32>
    %68 = arith.addf %65, %67 : vector<8x512xf32>
    %69 = vector.extract_strided_slice %68 {offsets = [0, 0], sizes = [8, 384], strides = [1, 1]} : vector<8x512xf32> to vector<8x384xf32>
    %70 = arith.negf %69 : vector<8x384xf32>
    %71 = math.exp %70 : vector<8x384xf32>
    %cst_30 = arith.constant 1.000000e+00 : f32
    %72 = vector.broadcast %cst_30 : f32 to vector<8x384xf32>
    %73 = arith.addf %72, %71 : vector<8x384xf32>
    %74 = arith.divf %72, %73 : vector<8x384xf32>
    %75 = vector.extract_strided_slice %68 {offsets = [0, 384], sizes = [8, 128], strides = [1, 1]} : vector<8x512xf32> to vector<8x128xf32>
    %76 = math.tanh %75 : vector<8x128xf32>
    %77 = vector.extract_strided_slice %74 {offsets = [0, 0], sizes = [8, 128], strides = [1, 1]} : vector<8x384xf32> to vector<8x128xf32>
    %78 = vector.extract_strided_slice %74 {offsets = [0, 128], sizes = [8, 128], strides = [1, 1]} : vector<8x384xf32> to vector<8x128xf32>
    %79 = vector.extract_strided_slice %74 {offsets = [0, 256], sizes = [8, 128], strides = [1, 1]} : vector<8x384xf32> to vector<8x128xf32>
    %80 = arith.mulf %78, %58 : vector<8x128xf32>
    %81 = arith.mulf %77, %76 : vector<8x128xf32>
    %82 = arith.addf %80, %81 : vector<8x128xf32>
    %83 = math.tanh %82 : vector<8x128xf32>
    %84 = arith.mulf %79, %83 : vector<8x128xf32>
    %c3_i32 = arith.constant 3 : i32
    %c8_i32_31 = arith.constant 8 : i32
    %85 = arith.muli %c3_i32, %c8_i32_31 : i32
    %86 = tpu.assume_multiple %85, 8 : i32
    %c0_32 = arith.constant 0 : index
    %c0_33 = arith.constant 0 : index
    %87 = vector.load %arg4[%c0_32, %c0_33] : memref<128x512xbf16, #tpu.memory_space<vmem>>, vector<128x512xbf16>
    %88 = arith.index_cast %86 : i32 to index
    %c0_34 = arith.constant 0 : index
    %89 = vector.load %arg9[%88, %c0_34] : memref<64x512xf32, #tpu.memory_space<vmem>>, vector<8x512xf32>
    %90 = arith.truncf %84 : vector<8x128xf32> to vector<8x128xbf16>
    %cst_35 = arith.constant dense<0.000000e+00> : vector<8x512xf32>
    %91 = tpu.matmul %90, %87, %cst_35 {dimension_numbers = #tpu.dot_dimension_numbers<[1], [0], [0], [1], [0, 0, 1, 1], [], []>} : vector<8x128xbf16>, vector<128x512xbf16>, vector<8x512xf32> -> vector<8x512xf32>
    %92 = arith.addf %89, %91 : vector<8x512xf32>
    %93 = vector.extract_strided_slice %92 {offsets = [0, 0], sizes = [8, 384], strides = [1, 1]} : vector<8x512xf32> to vector<8x384xf32>
    %94 = arith.negf %93 : vector<8x384xf32>
    %95 = math.exp %94 : vector<8x384xf32>
    %cst_36 = arith.constant 1.000000e+00 : f32
    %96 = vector.broadcast %cst_36 : f32 to vector<8x384xf32>
    %97 = arith.addf %96, %95 : vector<8x384xf32>
    %98 = arith.divf %96, %97 : vector<8x384xf32>
    %99 = vector.extract_strided_slice %92 {offsets = [0, 384], sizes = [8, 128], strides = [1, 1]} : vector<8x512xf32> to vector<8x128xf32>
    %100 = math.tanh %99 : vector<8x128xf32>
    %101 = vector.extract_strided_slice %98 {offsets = [0, 0], sizes = [8, 128], strides = [1, 1]} : vector<8x384xf32> to vector<8x128xf32>
    %102 = vector.extract_strided_slice %98 {offsets = [0, 128], sizes = [8, 128], strides = [1, 1]} : vector<8x384xf32> to vector<8x128xf32>
    %103 = vector.extract_strided_slice %98 {offsets = [0, 256], sizes = [8, 128], strides = [1, 1]} : vector<8x384xf32> to vector<8x128xf32>
    %104 = arith.mulf %102, %82 : vector<8x128xf32>
    %105 = arith.mulf %101, %100 : vector<8x128xf32>
    %106 = arith.addf %104, %105 : vector<8x128xf32>
    %107 = math.tanh %106 : vector<8x128xf32>
    %108 = arith.mulf %103, %107 : vector<8x128xf32>
    %c4_i32 = arith.constant 4 : i32
    %c8_i32_37 = arith.constant 8 : i32
    %109 = arith.muli %c4_i32, %c8_i32_37 : i32
    %110 = tpu.assume_multiple %109, 8 : i32
    %c0_38 = arith.constant 0 : index
    %c0_39 = arith.constant 0 : index
    %111 = vector.load %arg4[%c0_38, %c0_39] : memref<128x512xbf16, #tpu.memory_space<vmem>>, vector<128x512xbf16>
    %112 = arith.index_cast %110 : i32 to index
    %c0_40 = arith.constant 0 : index
    %113 = vector.load %arg9[%112, %c0_40] : memref<64x512xf32, #tpu.memory_space<vmem>>, vector<8x512xf32>
    %114 = arith.truncf %108 : vector<8x128xf32> to vector<8x128xbf16>
    %cst_41 = arith.constant dense<0.000000e+00> : vector<8x512xf32>
    %115 = tpu.matmul %114, %111, %cst_41 {dimension_numbers = #tpu.dot_dimension_numbers<[1], [0], [0], [1], [0, 0, 1, 1], [], []>} : vector<8x128xbf16>, vector<128x512xbf16>, vector<8x512xf32> -> vector<8x512xf32>
    %116 = arith.addf %113, %115 : vector<8x512xf32>
    %117 = vector.extract_strided_slice %116 {offsets = [0, 0], sizes = [8, 384], strides = [1, 1]} : vector<8x512xf32> to vector<8x384xf32>
    %118 = arith.negf %117 : vector<8x384xf32>
    %119 = math.exp %118 : vector<8x384xf32>
    %cst_42 = arith.constant 1.000000e+00 : f32
    %120 = vector.broadcast %cst_42 : f32 to vector<8x384xf32>
    %121 = arith.addf %120, %119 : vector<8x384xf32>
    %122 = arith.divf %120, %121 : vector<8x384xf32>
    %123 = vector.extract_strided_slice %116 {offsets = [0, 384], sizes = [8, 128], strides = [1, 1]} : vector<8x512xf32> to vector<8x128xf32>
    %124 = math.tanh %123 : vector<8x128xf32>
    %125 = vector.extract_strided_slice %122 {offsets = [0, 0], sizes = [8, 128], strides = [1, 1]} : vector<8x384xf32> to vector<8x128xf32>
    %126 = vector.extract_strided_slice %122 {offsets = [0, 128], sizes = [8, 128], strides = [1, 1]} : vector<8x384xf32> to vector<8x128xf32>
    %127 = vector.extract_strided_slice %122 {offsets = [0, 256], sizes = [8, 128], strides = [1, 1]} : vector<8x384xf32> to vector<8x128xf32>
    %128 = arith.mulf %126, %106 : vector<8x128xf32>
    %129 = arith.mulf %125, %124 : vector<8x128xf32>
    %130 = arith.addf %128, %129 : vector<8x128xf32>
    %131 = math.tanh %130 : vector<8x128xf32>
    %132 = arith.mulf %127, %131 : vector<8x128xf32>
    %c5_i32 = arith.constant 5 : i32
    %c8_i32_43 = arith.constant 8 : i32
    %133 = arith.muli %c5_i32, %c8_i32_43 : i32
    %134 = tpu.assume_multiple %133, 8 : i32
    %c0_44 = arith.constant 0 : index
    %c0_45 = arith.constant 0 : index
    %135 = vector.load %arg4[%c0_44, %c0_45] : memref<128x512xbf16, #tpu.memory_space<vmem>>, vector<128x512xbf16>
    %136 = arith.index_cast %134 : i32 to index
    %c0_46 = arith.constant 0 : index
    %137 = vector.load %arg9[%136, %c0_46] : memref<64x512xf32, #tpu.memory_space<vmem>>, vector<8x512xf32>
    %138 = arith.truncf %132 : vector<8x128xf32> to vector<8x128xbf16>
    %cst_47 = arith.constant dense<0.000000e+00> : vector<8x512xf32>
    %139 = tpu.matmul %138, %135, %cst_47 {dimension_numbers = #tpu.dot_dimension_numbers<[1], [0], [0], [1], [0, 0, 1, 1], [], []>} : vector<8x128xbf16>, vector<128x512xbf16>, vector<8x512xf32> -> vector<8x512xf32>
    %140 = arith.addf %137, %139 : vector<8x512xf32>
    %141 = vector.extract_strided_slice %140 {offsets = [0, 0], sizes = [8, 384], strides = [1, 1]} : vector<8x512xf32> to vector<8x384xf32>
    %142 = arith.negf %141 : vector<8x384xf32>
    %143 = math.exp %142 : vector<8x384xf32>
    %cst_48 = arith.constant 1.000000e+00 : f32
    %144 = vector.broadcast %cst_48 : f32 to vector<8x384xf32>
    %145 = arith.addf %144, %143 : vector<8x384xf32>
    %146 = arith.divf %144, %145 : vector<8x384xf32>
    %147 = vector.extract_strided_slice %140 {offsets = [0, 384], sizes = [8, 128], strides = [1, 1]} : vector<8x512xf32> to vector<8x128xf32>
    %148 = math.tanh %147 : vector<8x128xf32>
    %149 = vector.extract_strided_slice %146 {offsets = [0, 0], sizes = [8, 128], strides = [1, 1]} : vector<8x384xf32> to vector<8x128xf32>
    %150 = vector.extract_strided_slice %146 {offsets = [0, 128], sizes = [8, 128], strides = [1, 1]} : vector<8x384xf32> to vector<8x128xf32>
    %151 = vector.extract_strided_slice %146 {offsets = [0, 256], sizes = [8, 128], strides = [1, 1]} : vector<8x384xf32> to vector<8x128xf32>
    %152 = arith.mulf %150, %130 : vector<8x128xf32>
    %153 = arith.mulf %149, %148 : vector<8x128xf32>
    %154 = arith.addf %152, %153 : vector<8x128xf32>
    %155 = math.tanh %154 : vector<8x128xf32>
    %156 = arith.mulf %151, %155 : vector<8x128xf32>
    %c6_i32 = arith.constant 6 : i32
    %c8_i32_49 = arith.constant 8 : i32
    %157 = arith.muli %c6_i32, %c8_i32_49 : i32
    %158 = tpu.assume_multiple %157, 8 : i32
    %c0_50 = arith.constant 0 : index
    %c0_51 = arith.constant 0 : index
    %159 = vector.load %arg4[%c0_50, %c0_51] : memref<128x512xbf16, #tpu.memory_space<vmem>>, vector<128x512xbf16>
    %160 = arith.index_cast %158 : i32 to index
    %c0_52 = arith.constant 0 : index
    %161 = vector.load %arg9[%160, %c0_52] : memref<64x512xf32, #tpu.memory_space<vmem>>, vector<8x512xf32>
    %162 = arith.truncf %156 : vector<8x128xf32> to vector<8x128xbf16>
    %cst_53 = arith.constant dense<0.000000e+00> : vector<8x512xf32>
    %163 = tpu.matmul %162, %159, %cst_53 {dimension_numbers = #tpu.dot_dimension_numbers<[1], [0], [0], [1], [0, 0, 1, 1], [], []>} : vector<8x128xbf16>, vector<128x512xbf16>, vector<8x512xf32> -> vector<8x512xf32>
    %164 = arith.addf %161, %163 : vector<8x512xf32>
    %165 = vector.extract_strided_slice %164 {offsets = [0, 0], sizes = [8, 384], strides = [1, 1]} : vector<8x512xf32> to vector<8x384xf32>
    %166 = arith.negf %165 : vector<8x384xf32>
    %167 = math.exp %166 : vector<8x384xf32>
    %cst_54 = arith.constant 1.000000e+00 : f32
    %168 = vector.broadcast %cst_54 : f32 to vector<8x384xf32>
    %169 = arith.addf %168, %167 : vector<8x384xf32>
    %170 = arith.divf %168, %169 : vector<8x384xf32>
    %171 = vector.extract_strided_slice %164 {offsets = [0, 384], sizes = [8, 128], strides = [1, 1]} : vector<8x512xf32> to vector<8x128xf32>
    %172 = math.tanh %171 : vector<8x128xf32>
    %173 = vector.extract_strided_slice %170 {offsets = [0, 0], sizes = [8, 128], strides = [1, 1]} : vector<8x384xf32> to vector<8x128xf32>
    %174 = vector.extract_strided_slice %170 {offsets = [0, 128], sizes = [8, 128], strides = [1, 1]} : vector<8x384xf32> to vector<8x128xf32>
    %175 = vector.extract_strided_slice %170 {offsets = [0, 256], sizes = [8, 128], strides = [1, 1]} : vector<8x384xf32> to vector<8x128xf32>
    %176 = arith.mulf %174, %154 : vector<8x128xf32>
    %177 = arith.mulf %173, %172 : vector<8x128xf32>
    %178 = arith.addf %176, %177 : vector<8x128xf32>
    %179 = math.tanh %178 : vector<8x128xf32>
    %180 = arith.mulf %175, %179 : vector<8x128xf32>
    %c7_i32 = arith.constant 7 : i32
    %c8_i32_55 = arith.constant 8 : i32
    %181 = arith.muli %c7_i32, %c8_i32_55 : i32
    %182 = tpu.assume_multiple %181, 8 : i32
    %c0_56 = arith.constant 0 : index
    %c0_57 = arith.constant 0 : index
    %183 = vector.load %arg4[%c0_56, %c0_57] : memref<128x512xbf16, #tpu.memory_space<vmem>>, vector<128x512xbf16>
    %184 = arith.index_cast %182 : i32 to index
    %c0_58 = arith.constant 0 : index
    %185 = vector.load %arg9[%184, %c0_58] : memref<64x512xf32, #tpu.memory_space<vmem>>, vector<8x512xf32>
    %186 = arith.truncf %180 : vector<8x128xf32> to vector<8x128xbf16>
    %cst_59 = arith.constant dense<0.000000e+00> : vector<8x512xf32>
    %187 = tpu.matmul %186, %183, %cst_59 {dimension_numbers = #tpu.dot_dimension_numbers<[1], [0], [0], [1], [0, 0, 1, 1], [], []>} : vector<8x128xbf16>, vector<128x512xbf16>, vector<8x512xf32> -> vector<8x512xf32>
    %188 = arith.addf %185, %187 : vector<8x512xf32>
    %189 = vector.extract_strided_slice %188 {offsets = [0, 0], sizes = [8, 384], strides = [1, 1]} : vector<8x512xf32> to vector<8x384xf32>
    %190 = arith.negf %189 : vector<8x384xf32>
    %191 = math.exp %190 : vector<8x384xf32>
    %cst_60 = arith.constant 1.000000e+00 : f32
    %192 = vector.broadcast %cst_60 : f32 to vector<8x384xf32>
    %193 = arith.addf %192, %191 : vector<8x384xf32>
    %194 = arith.divf %192, %193 : vector<8x384xf32>
    %195 = vector.extract_strided_slice %188 {offsets = [0, 384], sizes = [8, 128], strides = [1, 1]} : vector<8x512xf32> to vector<8x128xf32>
    %196 = math.tanh %195 : vector<8x128xf32>
    %197 = vector.extract_strided_slice %194 {offsets = [0, 0], sizes = [8, 128], strides = [1, 1]} : vector<8x384xf32> to vector<8x128xf32>
    %198 = vector.extract_strided_slice %194 {offsets = [0, 128], sizes = [8, 128], strides = [1, 1]} : vector<8x384xf32> to vector<8x128xf32>
    %199 = vector.extract_strided_slice %194 {offsets = [0, 256], sizes = [8, 128], strides = [1, 1]} : vector<8x384xf32> to vector<8x128xf32>
    %200 = arith.mulf %198, %178 : vector<8x128xf32>
    %201 = arith.mulf %197, %196 : vector<8x128xf32>
    %202 = arith.addf %200, %201 : vector<8x128xf32>
    %203 = math.tanh %202 : vector<8x128xf32>
    %204 = arith.mulf %199, %203 : vector<8x128xf32>
    %c8_i32_61 = arith.constant 8 : i32
    %c0_62 = arith.constant 0 : index
    %c0_63 = arith.constant 0 : index
    %205 = vector.load %arg10[%c0_62, %c0_63] : memref<8x128xf32, #tpu.memory_space<vmem>>, vector<8x128xf32>
    tpu.vector_store %arg10[%c0_62, %c0_63], %204 {strides = array<i32>} : memref<8x128xf32, #tpu.memory_space<vmem>>, vector<8x128xf32>,
    %c0_64 = arith.constant 0 : index
    %c0_65 = arith.constant 0 : index
    %206 = vector.load %arg11[%c0_64, %c0_65] : memref<8x128xf32, #tpu.memory_space<vmem>>, vector<8x128xf32>
    tpu.vector_store %arg11[%c0_64, %c0_65], %202 {strides = array<i32>} : memref<8x128xf32, #tpu.memory_space<vmem>>, vector<8x128xf32>,
    %c0_i32_66 = arith.constant 0 : i32
    %207 = arith.cmpi eq, %arg1, %c0_i32_66 : i32
    %208 = arith.extui %207 : i1 to i32
    %c0_i32_67 = arith.constant 0 : i32
    %209 = arith.cmpi ne, %208, %c0_i32_67 : i32
    scf.if %209 {
      %c0_68 = arith.constant 0 : index
      %c0_69 = arith.constant 0 : index
      %210 = vector.load %arg6[%c0_68, %c0_69] : memref<1x128xf32, #tpu.memory_space<vmem>>, vector<1x128xf32>
      %211 = vector.broadcast %210 : vector<1x128xf32> to vector<8x128xf32>
      %212 = arith.mulf %204, %211 : vector<8x128xf32>
      %cst_70 = arith.constant dense<0.000000e+00> : vector<8xf32>
      %213 = vector.multi_reduction <add>, %212, %cst_70 [1] : vector<8x128xf32> to vector<8xf32>
      %214 = vector.shape_cast %213 : vector<8xf32> to vector<8x1xf32>
      %c0_71 = arith.constant 0 : index
      %c0_72 = arith.constant 0 : index
      %215 = vector.load %arg7[%c0_71, %c0_72] : memref<1x1xf32, #tpu.memory_space<vmem>>, vector<1x1xf32>
      %216 = vector.broadcast %215 : vector<1x1xf32> to vector<8x1xf32>
      %217 = arith.addf %214, %216 : vector<8x1xf32>
      %c0_73 = arith.constant 0 : index
      %c0_74 = arith.constant 0 : index
      %218 = vector.load %arg8[%c0_73, %c0_74] : memref<8x1xf32, #tpu.memory_space<vmem>>, vector<8x1xf32>
      tpu.vector_store %arg8[%c0_73, %c0_74], %217 {strides = array<i32>} : memref<8x1xf32, #tpu.memory_space<vmem>>, vector<8x1xf32>,
    } else {
    }
    return
  }
  func.func @transform_0(%arg0: i32, %arg1: i32) -> (i32, i32, i32) {
    %c0_i32 = arith.constant 0 : i32
    %c0_i32_0 = arith.constant 0 : i32
    return %arg0, %arg1, %c0_i32 : i32, i32, i32
  }
  func.func @transform_1(%arg0: i32, %arg1: i32) -> (i32, i32) {
    %c0_i32 = arith.constant 0 : i32
    %c0_i32_0 = arith.constant 0 : i32
    %c0_i32_1 = arith.constant 0 : i32
    return %c0_i32, %c0_i32_0 : i32, i32
  }
  func.func @transform_2(%arg0: i32, %arg1: i32) -> (i32, i32) {
    %c0_i32 = arith.constant 0 : i32
    %c0_i32_0 = arith.constant 0 : i32
    %c0_i32_1 = arith.constant 0 : i32
    return %c0_i32, %c0_i32_0 : i32, i32
  }
  func.func @transform_3(%arg0: i32, %arg1: i32) -> (i32, i32) {
    %c0_i32 = arith.constant 0 : i32
    %c0_i32_0 = arith.constant 0 : i32
    %c0_i32_1 = arith.constant 0 : i32
    return %c0_i32, %c0_i32_0 : i32, i32
  }
  func.func @transform_4(%arg0: i32, %arg1: i32) -> (i32, i32) {
    %c0_i32 = arith.constant 0 : i32
    %c0_i32_0 = arith.constant 0 : i32
    %c0_i32_1 = arith.constant 0 : i32
    return %c0_i32, %c0_i32_0 : i32, i32
  }
  func.func @transform_5(%arg0: i32, %arg1: i32) -> (i32, i32) {
    %c0_i32 = arith.constant 0 : i32
    %c0_i32_0 = arith.constant 0 : i32
    %c0_i32_1 = arith.constant 0 : i32
    return %c0_i32, %c0_i32_0 : i32, i32
  }
  func.func @transform_6(%arg0: i32, %arg1: i32) -> (i32, i32) {
    %c0_i32 = arith.constant 0 : i32
    %c0_i32_0 = arith.constant 0 : i32
    return %arg0, %c0_i32 : i32, i32
  }
}

</mosaic_0001>

<llo_original>
// kernel: sequence_tagging_forward.1
$region0: #{sequence_tagging_forward.1}
  #allocation0 [shape = 'u32[]', space=smem, size = 0x4, offset = 0x4, fixed_abs, tag = 'smem constant byte address 0x4 - core index']
  #allocation1 [shape = 'u32[72,128]{1,0:T(1,128)}', space=vmem, size = 0x9000, scoped, tag = 'internal scratch']
  #allocation2 [shape = 'f32[64,512]{1,0:T(8,128)}', space=vmem, size = 0x20000, scoped, tag = 'scratch operand']
  #allocation3 [shape = 'f32[8,128]{1,0:T(8,128)}', space=vmem, size = 0x1000, scoped, tag = 'scratch operand']
  #allocation4 [shape = 'f32[8,128]{1,0:T(8,128)}', space=vmem, size = 0x1000, scoped, tag = 'scratch operand']
  #allocation5 [shape = 'f32[1,1]{1,0:T(1,128)S(1)}', space=vmem, size = 0x200, scoped, tag = 'scoped memory for sequence_tagging_forward.1']
  %s0 = inlined_call_operand.vmem [shape: bf16[1,64,32], index: 0, kind: input, shape index: {}]
  %s1 = inlined_call_operand.vmem [shape: bf16[32,512], index: 1, kind: input, shape index: {}]
  %s2 = inlined_call_operand.vmem [shape: bf16[128,512], index: 2, kind: input, shape index: {}]
  %s3 = inlined_call_operand.vmem [shape: f32[1,512], index: 3, kind: input, shape index: {}]
  %s4 = inlined_call_operand.vmem [shape: f32[1,128], index: 4, kind: input, shape index: {}]
  %s5 = inlined_call_operand.<no memory space> [shape: f32[1,1], index: 5, kind: input, shape index: {}]
  %s6 = inlined_call_operand.vmem [shape: f32[8,1], index: 6, kind: output, shape index: {}]
  %s7 = sld [smem:[#allocation0]]
  $region42: #{sequence_tagging_forward.1} parent=0
    _
  %s9 = ssub.s32 1, %s7
  %s10 = scalar_select 0, %s9, %s7
  %v11 = vstv %s5
  %12 = vst [vmem:[#allocation5] sm:$0x1] %v11
  // Predicated region
  $region2: #{sequence_tagging_forward.1} parent=0 // pred_check
    _
  $region3: #{sequence_tagging_forward.1} parent=0 // pred_check_branch
    %14 = sbr.rel (0) target = $region5
  $region4: #{sequence_tagging_forward.1} parent=0 // pred_region
    _
  $region5: #{sequence_tagging_forward.1} parent=0 // pred_fallthru
    _
  // Predicated region
  $region6: #{sequence_tagging_forward.1} parent=0 // pred_check
    _
  $region7: #{sequence_tagging_forward.1} parent=0 // pred_check_branch
    %16 = sbr.rel (0) target = $region9
  $region8: #{sequence_tagging_forward.1} parent=0 // pred_region
    _
  $region9: #{sequence_tagging_forward.1} parent=0 // pred_fallthru
    _
  // Predicated region
  $region10: #{sequence_tagging_forward.1} parent=0 // pred_check
    _
  $region11: #{sequence_tagging_forward.1} parent=0 // pred_check_branch
    %18 = sbr.rel (0) target = $region13
  $region12: #{sequence_tagging_forward.1} parent=0 // pred_region
    _
  $region13: #{sequence_tagging_forward.1} parent=0 // pred_fallthru
    _
  // Predicated region
  $region14: #{sequence_tagging_forward.1} parent=0 // pred_check
    _
  $region15: #{sequence_tagging_forward.1} parent=0 // pred_check_branch
    %20 = sbr.rel (0) target = $region17
  $region16: #{sequence_tagging_forward.1} parent=0 // pred_region
    _
  $region17: #{sequence_tagging_forward.1} parent=0 // pred_fallthru
    _
  // Predicated region
  $region18: #{sequence_tagging_forward.1} parent=0 // pred_check
    _
  $region19: #{sequence_tagging_forward.1} parent=0 // pred_check_branch
    %22 = sbr.rel (0) target = $region21
  $region20: #{sequence_tagging_forward.1} parent=0 // pred_region
    _
  $region21: #{sequence_tagging_forward.1} parent=0 // pred_fallthru
    _
  // Predicated region
  $region22: #{sequence_tagging_forward.1} parent=0 // pred_check
    _
  $region23: #{sequence_tagging_forward.1} parent=0 // pred_check_branch
    %24 = sbr.rel (0) target = $region25
  $region24: #{sequence_tagging_forward.1} parent=0 // pred_region
    _
  $region25: #{sequence_tagging_forward.1} parent=0 // pred_fallthru
    _
  %p26 = scmp.eq.s32.totalorder 0, 0
  // Predicated region
  $region26: #{sequence_tagging_forward.1} parent=0 // pred_check
    %p27 = pneg %p26
  $region27: #{sequence_tagging_forward.1} parent=0 // pred_check_branch
    %29 = sbr.rel (%p27) target = $region29
  $region28: #{sequence_tagging_forward.1} parent=0 // pred_region
    %30 = vst [vmem:[#allocation3] sm:$0xff] 0.0
    %31 = vst [vmem:[#allocation4] sm:$0xff] 0.0
  $region29: #{sequence_tagging_forward.1} parent=0 // pred_fallthru
    _
  %v32 = vld [vmem:[%s0] sm:$0xf]
  %v33 = vld [vmem:[%s0 + $0x4] sm:$0xf]
  %v34 = vld [vmem:[%s0 + $0x8] sm:$0xf]
  %v35 = vld [vmem:[%s0 + $0xc] sm:$0xf]
  %v36 = vld [vmem:[%s0 + $0x10] sm:$0xf]
  %v37 = vld [vmem:[%s0 + $0x14] sm:$0xf]
  %v38 = vld [vmem:[%s0 + $0x18] sm:$0xf]
  %v39 = vld [vmem:[%s0 + $0x1c] sm:$0xf]
  %v40 = vld [vmem:[%s1] sm:$0xff]
  %v41 = vld [vmem:[%s1 + $0x8] sm:$0xff]
  %v42 = vld [vmem:[%s1 + $0x10] sm:$0xff]
  %v43 = vld [vmem:[%s1 + $0x18] sm:$0xff]
  %v44 = vld [vmem:[%s1 + $0x20] sm:$0xff]
  %v45 = vld [vmem:[%s1 + $0x28] sm:$0xff]
  %v46 = vld [vmem:[%s1 + $0x30] sm:$0xff]
  %v47 = vld [vmem:[%s1 + $0x38] sm:$0xff]
  %v48 = vld [vmem:[%s3] sm:$0xf]
  %v50 = vperm.slane %v48, 0
  %v51 = vperm.slane %v48, 1
  %v52 = vperm.slane %v48, 2
  %v53 = vperm.slane %v48, 3
  %v66 = vunpack.c.l.b16 %v32
  %v67 = vunpack.c.l.b16 %v33
  %v68 = vunpack.c.l.b16 %v34
  %v69 = vunpack.c.l.b16 %v35
  %v70 = vunpack.c.l.b16 %v36
  %v71 = vunpack.c.l.b16 %v37
  %v72 = vunpack.c.l.b16 %v38
  %v73 = vunpack.c.l.b16 %v39
  %v74 = vpack.c.b16 %v67, %v66
  %v75 = vpack.c.b16 %v69, %v68
  %v76 = vpack.c.b16 %v71, %v70
  %v77 = vpack.c.b16 %v73, %v72
  %v86 = vunpack.c.l.b16 %v40
  %v87 = vunpack.c.h.b16 %v40
  %v88 = vunpack.c.l.b16 %v41
  %v89 = vunpack.c.h.b16 %v41
  %v90 = vunpack.c.l.b16 %v42
  %v91 = vunpack.c.h.b16 %v42
  %v92 = vunpack.c.l.b16 %v43
  %v93 = vunpack.c.h.b16 %v43
  %v94 = vunpack.c.l.b16 %v44
  %v95 = vunpack.c.h.b16 %v44
  %v96 = vunpack.c.l.b16 %v45
  %v97 = vunpack.c.h.b16 %v45
  %v98 = vunpack.c.l.b16 %v46
  %v99 = vunpack.c.h.b16 %v46
  %v100 = vunpack.c.l.b16 %v47
  %v101 = vunpack.c.h.b16 %v47
  %v102 = vpack.c.b16 %v90, %v86
  %v103 = vpack.c.b16 %v91, %v87
  %v104 = vpack.c.b16 %v92, %v88
  %v105 = vpack.c.b16 %v93, %v89
  %v106 = vpack.c.b16 %v98, %v94
  %v107 = vpack.c.b16 %v99, %v95
  %v108 = vpack.c.b16 %v100, %v96
  %v109 = vpack.c.b16 %v101, %v97
  %vm118 = vcmask 261120
  %v120 = vsel %vm118, %v74, 0
  %v123 = vsel %vm118, %v75, 0
  %v126 = vsel %vm118, %v76, 0
  %v129 = vsel %vm118, %v77, 0
  %131 = vmatpush.bf16.msra.mxu0 0
  %132 = vmatpush.bf16.msra.mxu0 0
  %133 = vmatpush.bf16.msra.mxu0 0
  %134 = vmatpush.bf16.msra.mxu0 0
  %135 = vmatpush.bf16.msra.mxu0 0
  %136 = vmatpush.bf16.msra.mxu0 0
  %137 = vmatpush.bf16.msra.mxu0 %v106
  %138 = vmatpush.bf16.msra.mxu0 %v102
  %139 = vmatmul.bf16.gmra.mxu0 %v120
  %v140 = vpop.f32.mrf.mxu0
  %v141 = vadd.f32 %v50, %v140
  %v142 = vpop.f32.mrf.mxu0
  %v143 = vadd.f32 %v50, %v142
  %144 = vmatmul.bf16.gmra.mxu0 %v123
  %v145 = vpop.f32.mrf.mxu0
  %v146 = vadd.f32 %v50, %v145
  %v147 = vpop.f32.mrf.mxu0
  %v148 = vadd.f32 %v50, %v147
  %149 = vmatmul.bf16.gmra.mxu0 %v126
  %v150 = vpop.f32.mrf.mxu0
  %v151 = vadd.f32 %v50, %v150
  %v152 = vpop.f32.mrf.mxu0
  %v153 = vadd.f32 %v50, %v152
  %154 = vmatmul.bf16.gmra.mxu0 %v129
  %v155 = vpop.f32.mrf.mxu0
  %v156 = vadd.f32 %v50, %v155
  %v157 = vpop.f32.mrf.mxu0
  %v158 = vadd.f32 %v50, %v157
  %159 = vdwg.mxu0
  %160 = vmatpush.bf16.msra.mxu0 0
  %161 = vmatpush.bf16.msra.mxu0 0
  %162 = vmatpush.bf16.msra.mxu0 0
  %163 = vmatpush.bf16.msra.mxu0 0
  %164 = vmatpush.bf16.msra.mxu0 0
  %165 = vmatpush.bf16.msra.mxu0 0
  %166 = vmatpush.bf16.msra.mxu0 %v107
  %167 = vmatpush.bf16.msra.mxu0 %v103
  %168 = vmatmul.bf16.gmra.mxu0 %v120
  %v169 = vpop.f32.mrf.mxu0
  %v170 = vadd.f32 %v51, %v169
  %v171 = vpop.f32.mrf.mxu0
  %v172 = vadd.f32 %v51, %v171
  %173 = vmatmul.bf16.gmra.mxu0 %v123
  %v174 = vpop.f32.mrf.mxu0
  %v175 = vadd.f32 %v51, %v174
  %v176 = vpop.f32.mrf.mxu0
  %v177 = vadd.f32 %v51, %v176
  %178 = vmatmul.bf16.gmra.mxu0 %v126
  %v179 = vpop.f32.mrf.mxu0
  %v180 = vadd.f32 %v51, %v179
  %v181 = vpop.f32.mrf.mxu0
  %v182 = vadd.f32 %v51, %v181
  %183 = vmatmul.bf16.gmra.mxu0 %v129
  %v184 = vpop.f32.mrf.mxu0
  %v185 = vadd.f32 %v51, %v184
  %v186 = vpop.f32.mrf.mxu0
  %v187 = vadd.f32 %v51, %v186
  %188 = vdwg.mxu0
  %189 = vmatpush.bf16.msra.mxu0 0
  %190 = vmatpush.bf16.msra.mxu0 0
  %191 = vmatpush.bf16.msra.mxu0 0
  %192 = vmatpush.bf16.msra.mxu0 0
  %193 = vmatpush.bf16.msra.mxu0 0
  %194 = vmatpush.bf16.msra.mxu0 0
  %195 = vmatpush.bf16.msra.mxu0 %v108
  %196 = vmatpush.bf16.msra.mxu0 %v104
  %197 = vmatmul.bf16.gmra.mxu0 %v120
  %v198 = vpop.f32.mrf.mxu0
  %v199 = vadd.f32 %v52, %v198
  %v200 = vpop.f32.mrf.mxu0
  %v201 = vadd.f32 %v52, %v200
  %202 = vmatmul.bf16.gmra.mxu0 %v123
  %v203 = vpop.f32.mrf.mxu0
  %v204 = vadd.f32 %v52, %v203
  %v205 = vpop.f32.mrf.mxu0
  %v206 = vadd.f32 %v52, %v205
  %207 = vmatmul.bf16.gmra.mxu0 %v126
  %v208 = vpop.f32.mrf.mxu0
  %v209 = vadd.f32 %v52, %v208
  %v210 = vpop.f32.mrf.mxu0
  %v211 = vadd.f32 %v52, %v210
  %212 = vmatmul.bf16.gmra.mxu0 %v129
  %v213 = vpop.f32.mrf.mxu0
  %v214 = vadd.f32 %v52, %v213
  %v215 = vpop.f32.mrf.mxu0
  %v216 = vadd.f32 %v52, %v215
  %217 = vdwg.mxu0
  %218 = vmatpush.bf16.msra.mxu0 0
  %219 = vmatpush.bf16.msra.mxu0 0
  %220 = vmatpush.bf16.msra.mxu0 0
  %221 = vmatpush.bf16.msra.mxu0 0
  %222 = vmatpush.bf16.msra.mxu0 0
  %223 = vmatpush.bf16.msra.mxu0 0
  %224 = vmatpush.bf16.msra.mxu0 %v109
  %225 = vmatpush.bf16.msra.mxu0 %v105
  %226 = vmatmul.bf16.gmra.mxu0 %v120
  %v227 = vpop.f32.mrf.mxu0
  %v228 = vadd.f32 %v53, %v227
  %v229 = vpop.f32.mrf.mxu0
  %v230 = vadd.f32 %v53, %v229
  %231 = vmatmul.bf16.gmra.mxu0 %v123
  %v232 = vpop.f32.mrf.mxu0
  %v233 = vadd.f32 %v53, %v232
  %v234 = vpop.f32.mrf.mxu0
  %v235 = vadd.f32 %v53, %v234
  %236 = vmatmul.bf16.gmra.mxu0 %v126
  %v237 = vpop.f32.mrf.mxu0
  %v238 = vadd.f32 %v53, %v237
  %v239 = vpop.f32.mrf.mxu0
  %v240 = vadd.f32 %v53, %v239
  %241 = vmatmul.bf16.gmra.mxu0 %v129
  %v242 = vpop.f32.mrf.mxu0
  %v243 = vadd.f32 %v53, %v242
  %v244 = vpop.f32.mrf.mxu0
  %v245 = vadd.f32 %v53, %v244
  %246 = vdwg.mxu0
  %247 = vst [vmem:[#allocation2] sm:$0xff] %v141
  %248 = vst [vmem:[#allocation2 + $0x8] sm:$0xff] %v170
  %249 = vst [vmem:[#allocation2 + $0x10] sm:$0xff] %v199
  %250 = vst [vmem:[#allocation2 + $0x18] sm:$0xff] %v228
  %251 = vst [vmem:[#allocation2 + $0x20] sm:$0xff] %v143
  %252 = vst [vmem:[#allocation2 + $0x28] sm:$0xff] %v172
  %253 = vst [vmem:[#allocation2 + $0x30] sm:$0xff] %v201
  %254 = vst [vmem:[#allocation2 + $0x38] sm:$0xff] %v230
  %255 = vst [vmem:[#allocation2 + $0x40] sm:$0xff] %v146
  %256 = vst [vmem:[#allocation2 + $0x48] sm:$0xff] %v175
  %257 = vst [vmem:[#allocation2 + $0x50] sm:$0xff] %v204
  %258 = vst [vmem:[#allocation2 + $0x58] sm:$0xff] %v233
  %259 = vst [vmem:[#allocation2 + $0x60] sm:$0xff] %v148
  %260 = vst [vmem:[#allocation2 + $0x68] sm:$0xff] %v177
  %261 = vst [vmem:[#allocation2 + $0x70] sm:$0xff] %v206
  %262 = vst [vmem:[#allocation2 + $0x78] sm:$0xff] %v235
  %263 = vst [vmem:[#allocation2 + $0x80] sm:$0xff] %v151
  %264 = vst [vmem:[#allocation2 + $0x88] sm:$0xff] %v180
  %265 = vst [vmem:[#allocation2 + $0x90] sm:$0xff] %v209
  %266 = vst [vmem:[#allocation2 + $0x98] sm:$0xff] %v238
  %267 = vst [vmem:[#allocation2 + $0xa0] sm:$0xff] %v153
  %268 = vst [vmem:[#allocation2 + $0xa8] sm:$0xff] %v182
  %269 = vst [vmem:[#allocation2 + $0xb0] sm:$0xff] %v211
  %270 = vst [vmem:[#allocation2 + $0xb8] sm:$0xff] %v240
  %271 = vst [vmem:[#allocation2 + $0xc0] sm:$0xff] %v156
  %272 = vst [vmem:[#allocation2 + $0xc8] sm:$0xff] %v185
  %273 = vst [vmem:[#allocation2 + $0xd0] sm:$0xff] %v214
  %274 = vst [vmem:[#allocation2 + $0xd8] sm:$0xff] %v243
  %275 = vst [vmem:[#allocation2 + $0xe0] sm:$0xff] %v158
  %276 = vst [vmem:[#allocation2 + $0xe8] sm:$0xff] %v187
  %277 = vst [vmem:[#allocation2 + $0xf0] sm:$0xff] %v216
  %278 = vst [vmem:[#allocation2 + $0xf8] sm:$0xff] %v245
  %v279 = vld [vmem:[#allocation3] sm:$0xff]
  %v280 = vld [vmem:[#allocation4] sm:$0xff]
  %v281 = vld [vmem:[%s2] sm:$0xff]
  %v282 = vld [vmem:[%s2 + $0x8] sm:$0xff]
  %v283 = vld [vmem:[%s2 + $0x10] sm:$0xff]
  %v284 = vld [vmem:[%s2 + $0x18] sm:$0xff]
  %v285 = vld [vmem:[%s2 + $0x20] sm:$0xff]
  %v286 = vld [vmem:[%s2 + $0x28] sm:$0xff]
  %v287 = vld [vmem:[%s2 + $0x30] sm:$0xff]
  %v288 = vld [vmem:[%s2 + $0x38] sm:$0xff]
  %v289 = vld [vmem:[%s2 + $0x40] sm:$0xff]
  %v290 = vld [vmem:[%s2 + $0x48] sm:$0xff]
  %v291 = vld [vmem:[%s2 + $0x50] sm:$0xff]
  %v292 = vld [vmem:[%s2 + $0x58] sm:$0xff]
  %v293 = vld [vmem:[%s2 + $0x60] sm:$0xff]
  %v294 = vld [vmem:[%s2 + $0x68] sm:$0xff]
  %v295 = vld [vmem:[%s2 + $0x70] sm:$0xff]
  %v296 = vld [vmem:[%s2 + $0x78] sm:$0xff]
  %v297 = vld [vmem:[%s2 + $0x80] sm:$0xff]
  %v298 = vld [vmem:[%s2 + $0x88] sm:$0xff]
  %v299 = vld [vmem:[%s2 + $0x90] sm:$0xff]
  %v300 = vld [vmem:[%s2 + $0x98] sm:$0xff]
  %v301 = vld [vmem:[%s2 + $0xa0] sm:$0xff]
  %v302 = vld [vmem:[%s2 + $0xa8] sm:$0xff]
  %v303 = vld [vmem:[%s2 + $0xb0] sm:$0xff]
  %v304 = vld [vmem:[%s2 + $0xb8] sm:$0xff]
  %v305 = vld [vmem:[%s2 + $0xc0] sm:$0xff]
  %v306 = vld [vmem:[%s2 + $0xc8] sm:$0xff]
  %v307 = vld [vmem:[%s2 + $0xd0] sm:$0xff]
  %v308 = vld [vmem:[%s2 + $0xd8] sm:$0xff]
  %v309 = vld [vmem:[%s2 + $0xe0] sm:$0xff]
  %v310 = vld [vmem:[%s2 + $0xe8] sm:$0xff]
  %v311 = vld [vmem:[%s2 + $0xf0] sm:$0xff]
  %v312 = vld [vmem:[%s2 + $0xf8] sm:$0xff]
  %s313 = smul.u32 0, 4
  %s314 = smul.addr %s313, 8
  %s315 = scalar_lea.vmem [#allocation2], %s314
  %v316 = vld [vmem:[%s315] sm:$0xff]
  %v317 = vld [vmem:[%s315 + $0x8] sm:$0xff]
  %v318 = vld [vmem:[%s315 + $0x10] sm:$0xff]
  %v319 = vld [vmem:[%s315 + $0x18] sm:$0xff]
  %v320 = vpack.c.bf16 %v279, %v279
  %v353 = vunpack.c.l.b16 %v281
  %v354 = vunpack.c.h.b16 %v281
  %v355 = vunpack.c.l.b16 %v282
  %v356 = vunpack.c.h.b16 %v282
  %v357 = vunpack.c.l.b16 %v283
  %v358 = vunpack.c.h.b16 %v283
  %v359 = vunpack.c.l.b16 %v284
  %v360 = vunpack.c.h.b16 %v284
  %v361 = vunpack.c.l.b16 %v285
  %v362 = vunpack.c.h.b16 %v285
  %v363 = vunpack.c.l.b16 %v286
  %v364 = vunpack.c.h.b16 %v286
  %v365 = vunpack.c.l.b16 %v287
  %v366 = vunpack.c.h.b16 %v287
  %v367 = vunpack.c.l.b16 %v288
  %v368 = vunpack.c.h.b16 %v288
  %v369 = vunpack.c.l.b16 %v289
  %v370 = vunpack.c.h.b16 %v289
  %v371 = vunpack.c.l.b16 %v290
  %v372 = vunpack.c.h.b16 %v290
  %v373 = vunpack.c.l.b16 %v291
  %v374 = vunpack.c.h.b16 %v291
  %v375 = vunpack.c.l.b16 %v292
  %v376 = vunpack.c.h.b16 %v292
  %v377 = vunpack.c.l.b16 %v293
  %v378 = vunpack.c.h.b16 %v293
  %v379 = vunpack.c.l.b16 %v294
  %v380 = vunpack.c.h.b16 %v294
  %v381 = vunpack.c.l.b16 %v295
  %v382 = vunpack.c.h.b16 %v295
  %v383 = vunpack.c.l.b16 %v296
  %v384 = vunpack.c.h.b16 %v296
  %v385 = vunpack.c.l.b16 %v297
  %v386 = vunpack.c.h.b16 %v297
  %v387 = vunpack.c.l.b16 %v298
  %v388 = vunpack.c.h.b16 %v298
  %v389 = vunpack.c.l.b16 %v299
  %v390 = vunpack.c.h.b16 %v299
  %v391 = vunpack.c.l.b16 %v300
  %v392 = vunpack.c.h.b16 %v300
  %v393 = vunpack.c.l.b16 %v301
  %v394 = vunpack.c.h.b16 %v301
  %v395 = vunpack.c.l.b16 %v302
  %v396 = vunpack.c.h.b16 %v302
  %v397 = vunpack.c.l.b16 %v303
  %v398 = vunpack.c.h.b16 %v303
  %v399 = vunpack.c.l.b16 %v304
  %v400 = vunpack.c.h.b16 %v304
  %v401 = vunpack.c.l.b16 %v305
  %v402 = vunpack.c.h.b16 %v305
  %v403 = vunpack.c.l.b16 %v306
  %v404 = vunpack.c.h.b16 %v306
  %v405 = vunpack.c.l.b16 %v307
  %v406 = vunpack.c.h.b16 %v307
  %v407 = vunpack.c.l.b16 %v308
  %v408 = vunpack.c.h.b16 %v308
  %v409 = vunpack.c.l.b16 %v309
  %v410 = vunpack.c.h.b16 %v309
  %v411 = vunpack.c.l.b16 %v310
  %v412 = vunpack.c.h.b16 %v310
  %v413 = vunpack.c.l.b16 %v311
  %v414 = vunpack.c.h.b16 %v311
  %v415 = vunpack.c.l.b16 %v312
  %v416 = vunpack.c.h.b16 %v312
  %v417 = vpack.c.b16 %v357, %v353
  %v418 = vpack.c.b16 %v358, %v354
  %v419 = vpack.c.b16 %v359, %v355
  %v420 = vpack.c.b16 %v360, %v356
  %v421 = vpack.c.b16 %v365, %v361
  %v422 = vpack.c.b16 %v366, %v362
  %v423 = vpack.c.b16 %v367, %v363
  %v424 = vpack.c.b16 %v368, %v364
  %v425 = vpack.c.b16 %v373, %v369
  %v426 = vpack.c.b16 %v374, %v370
  %v427 = vpack.c.b16 %v375, %v371
  %v428 = vpack.c.b16 %v376, %v372
  %v429 = vpack.c.b16 %v381, %v377
  %v430 = vpack.c.b16 %v382, %v378
  %v431 = vpack.c.b16 %v383, %v379
  %v432 = vpack.c.b16 %v384, %v380
  %v433 = vpack.c.b16 %v389, %v385
  %v434 = vpack.c.b16 %v390, %v386
  %v435 = vpack.c.b16 %v391, %v387
  %v436 = vpack.c.b16 %v392, %v388
  %v437 = vpack.c.b16 %v397, %v393
  %v438 = vpack.c.b16 %v398, %v394
  %v439 = vpack.c.b16 %v399, %v395
  %v440 = vpack.c.b16 %v400, %v396
  %v441 = vpack.c.b16 %v405, %v401
  %v442 = vpack.c.b16 %v406, %v402
  %v443 = vpack.c.b16 %v407, %v403
  %v444 = vpack.c.b16 %v408, %v404
  %v445 = vpack.c.b16 %v413, %v409
  %v446 = vpack.c.b16 %v414, %v410
  %v447 = vpack.c.b16 %v415, %v411
  %v448 = vpack.c.b16 %v416, %v412
  %481 = vmatpush.bf16.msra.mxu0 %v445
  %482 = vmatpush.bf16.msra.mxu0 %v441
  %483 = vmatpush.bf16.msra.mxu0 %v437
  %484 = vmatpush.bf16.msra.mxu0 %v433
  %485 = vmatpush.bf16.msra.mxu0 %v429
  %486 = vmatpush.bf16.msra.mxu0 %v425
  %487 = vmatpush.bf16.msra.mxu0 %v421
  %488 = vmatpush.bf16.msra.mxu0 %v417
  %489 = vmatmul.bf16.gmra.mxu0 %v320
  %v490 = vpop.f32.mrf.mxu0
  %v491 = vadd.f32 0.0, %v490
  %v492 = vpop.f32.mrf.mxu0
  %493 = vdwg.mxu0
  %494 = vmatpush.bf16.msra.mxu0 %v446
  %495 = vmatpush.bf16.msra.mxu0 %v442
  %496 = vmatpush.bf16.msra.mxu0 %v438
  %497 = vmatpush.bf16.msra.mxu0 %v434
  %498 = vmatpush.bf16.msra.mxu0 %v430
  %499 = vmatpush.bf16.msra.mxu0 %v426
  %500 = vmatpush.bf16.msra.mxu0 %v422
  %501 = vmatpush.bf16.msra.mxu0 %v418
  %502 = vmatmul.bf16.gmra.mxu0 %v320
  %v503 = vpop.f32.mrf.mxu0
  %v504 = vadd.f32 0.0, %v503
  %v505 = vpop.f32.mrf.mxu0
  %506 = vdwg.mxu0
  %507 = vmatpush.bf16.msra.mxu0 %v447
  %508 = vmatpush.bf16.msra.mxu0 %v443
  %509 = vmatpush.bf16.msra.mxu0 %v439
  %510 = vmatpush.bf16.msra.mxu0 %v435
  %511 = vmatpush.bf16.msra.mxu0 %v431
  %512 = vmatpush.bf16.msra.mxu0 %v427
  %513 = vmatpush.bf16.msra.mxu0 %v423
  %514 = vmatpush.bf16.msra.mxu0 %v419
  %515 = vmatmul.bf16.gmra.mxu0 %v320
  %v516 = vpop.f32.mrf.mxu0
  %v517 = vadd.f32 0.0, %v516
  %v518 = vpop.f32.mrf.mxu0
  %519 = vdwg.mxu0
  %520 = vmatpush.bf16.msra.mxu0 %v448
  %521 = vmatpush.bf16.msra.mxu0 %v444
  %522 = vmatpush.bf16.msra.mxu0 %v440
  %523 = vmatpush.bf16.msra.mxu0 %v436
  %524 = vmatpush.bf16.msra.mxu0 %v432
  %525 = vmatpush.bf16.msra.mxu0 %v428
  %526 = vmatpush.bf16.msra.mxu0 %v424
  %527 = vmatpush.bf16.msra.mxu0 %v420
  %528 = vmatmul.bf16.gmra.mxu0 %v320
  %v529 = vpop.f32.mrf.mxu0
  %v530 = vadd.f32 0.0, %v529
  %v531 = vpop.f32.mrf.mxu0
  %532 = vdwg.mxu0
  %v533 = vadd.f32 %v316, %v491
  %v534 = vadd.f32 %v317, %v504
  %v535 = vadd.f32 %v318, %v517
  %v536 = vadd.f32 %v319, %v530
  %v537 = vxor.u32 %v533, 2147483648
  %v538 = vxor.u32 %v534, 2147483648
  %v539 = vxor.u32 %v535, 2147483648
  %v540 = vmul.f32 %v537, 1.442695
  %v541 = vpow.pop %v540
  %v542 = vmul.f32 %v538, 1.442695
  %v543 = vpow.pop %v542
  %v544 = vmul.f32 %v539, 1.442695
  %v545 = vpow.pop %v544
  %v546 = vadd.f32 %v541, 1.0
  %v547 = vadd.f32 %v543, 1.0
  %v548 = vadd.f32 %v545, 1.0
  %v549 = vrcp.pop %v546
  %v550 = vmul.f32 %v546, %v549
  %v551 = vsub.f32 1.0, %v550
  %v552 = vmul.f32 %v549, %v551
  %v553 = vadd.f32 %v549, %v552
  %vm554 = vweird.f32 %v546
  %vm555 = vweird.f32 %v549
  %vm556 = vmor %vm554, %vm555
  %v557 = vsel %vm556, %v549, %v553
  %v558 = vand.u32 2147483647, %v546
  %vm559 = vcmp.eq.f32.partialorder %v558, 8.507059e+37
  %v560 = vand.u32 %v546, 2147483648
  %v561 = vor.u32 1.1754944e-38, %v560
  %v562 = vsel %vm559, %v561, %v557
  %v563 = vmul.f32 1.0, %v562
  %v564 = vrcp.pop %v547
  %v565 = vmul.f32 %v547, %v564
  %v566 = vsub.f32 1.0, %v565
  %v567 = vmul.f32 %v564, %v566
  %v568 = vadd.f32 %v564, %v567
  %vm569 = vweird.f32 %v547
  %vm570 = vweird.f32 %v564
  %vm571 = vmor %vm569, %vm570
  %v572 = vsel %vm571, %v564, %v568
  %v573 = vand.u32 2147483647, %v547
  %vm574 = vcmp.eq.f32.partialorder %v573, 8.507059e+37
  %v575 = vand.u32 %v547, 2147483648
  %v576 = vor.u32 1.1754944e-38, %v575
  %v577 = vsel %vm574, %v576, %v572
  %v578 = vmul.f32 1.0, %v577
  %v579 = vrcp.pop %v548
  %v580 = vmul.f32 %v548, %v579
  %v581 = vsub.f32 1.0, %v580
  %v582 = vmul.f32 %v579, %v581
  %v583 = vadd.f32 %v579, %v582
  %vm584 = vweird.f32 %v548
  %vm585 = vweird.f32 %v579
  %vm586 = vmor %vm584, %vm585
  %v587 = vsel %vm586, %v579, %v583
  %v588 = vand.u32 2147483647, %v548
  %vm589 = vcmp.eq.f32.partialorder %v588, 8.507059e+37
  %v590 = vand.u32 %v548, 2147483648
  %v591 = vor.u32 1.1754944e-38, %v590
  %v592 = vsel %vm589, %v591, %v587
  %v593 = vmul.f32 1.0, %v592
  %v594 = vtanh.pop %v536
  %v595 = vmul.f32 %v578, %v280
  %v596 = vmul.f32 %v563, %v594
  %v597 = vadd.f32 %v595, %v596
  %v598 = vtanh.pop %v597
  %v599 = vmul.f32 %v593, %v598
  %s600 = smul.u32 1, 4
  %s601 = smul.addr %s600, 8
  %s602 = scalar_lea.vmem [#allocation2], %s601
  %v603 = vld [vmem:[%s602] sm:$0xff]
  %v604 = vld [vmem:[%s602 + $0x8] sm:$0xff]
  %v605 = vld [vmem:[%s602 + $0x10] sm:$0xff]
  %v606 = vld [vmem:[%s602 + $0x18] sm:$0xff]
  %v607 = vpack.c.bf16 %v599, %v599
  %608 = vmatpush.bf16.msra.mxu0 %v445
  %609 = vmatpush.bf16.msra.mxu0 %v441
  %610 = vmatpush.bf16.msra.mxu0 %v437
  %611 = vmatpush.bf16.msra.mxu0 %v433
  %612 = vmatpush.bf16.msra.mxu0 %v429
  %613 = vmatpush.bf16.msra.mxu0 %v425
  %614 = vmatpush.bf16.msra.mxu0 %v421
  %615 = vmatpush.bf16.msra.mxu0 %v417
  %616 = vmatmul.bf16.gmra.mxu0 %v607
  %v617 = vpop.f32.mrf.mxu0
  %v618 = vadd.f32 0.0, %v617
  %v619 = vpop.f32.mrf.mxu0
  %620 = vdwg.mxu0
  %621 = vmatpush.bf16.msra.mxu0 %v446
  %622 = vmatpush.bf16.msra.mxu0 %v442
  %623 = vmatpush.bf16.msra.mxu0 %v438
  %624 = vmatpush.bf16.msra.mxu0 %v434
  %625 = vmatpush.bf16.msra.mxu0 %v430
  %626 = vmatpush.bf16.msra.mxu0 %v426
  %627 = vmatpush.bf16.msra.mxu0 %v422
  %628 = vmatpush.bf16.msra.mxu0 %v418
  %629 = vmatmul.bf16.gmra.mxu0 %v607
  %v630 = vpop.f32.mrf.mxu0
  %v631 = vadd.f32 0.0, %v630
  %v632 = vpop.f32.mrf.mxu0
  %633 = vdwg.mxu0
  %634 = vmatpush.bf16.msra.mxu0 %v447
  %635 = vmatpush.bf16.msra.mxu0 %v443
  %636 = vmatpush.bf16.msra.mxu0 %v439
  %637 = vmatpush.bf16.msra.mxu0 %v435
  %638 = vmatpush.bf16.msra.mxu0 %v431
  %639 = vmatpush.bf16.msra.mxu0 %v427
  %640 = vmatpush.bf16.msra.mxu0 %v423
  %641 = vmatpush.bf16.msra.mxu0 %v419
  %642 = vmatmul.bf16.gmra.mxu0 %v607
  %v643 = vpop.f32.mrf.mxu0
  %v644 = vadd.f32 0.0, %v643
  %v645 = vpop.f32.mrf.mxu0
  %646 = vdwg.mxu0
  %647 = vmatpush.bf16.msra.mxu0 %v448
  %648 = vmatpush.bf16.msra.mxu0 %v444
  %649 = vmatpush.bf16.msra.mxu0 %v440
  %650 = vmatpush.bf16.msra.mxu0 %v436
  %651 = vmatpush.bf16.msra.mxu0 %v432
  %652 = vmatpush.bf16.msra.mxu0 %v428
  %653 = vmatpush.bf16.msra.mxu0 %v424
  %654 = vmatpush.bf16.msra.mxu0 %v420
  %655 = vmatmul.bf16.gmra.mxu0 %v607
  %v656 = vpop.f32.mrf.mxu0
  %v657 = vadd.f32 0.0, %v656
  %v658 = vpop.f32.mrf.mxu0
  %659 = vdwg.mxu0
  %v660 = vadd.f32 %v603, %v618
  %v661 = vadd.f32 %v604, %v631
  %v662 = vadd.f32 %v605, %v644
  %v663 = vadd.f32 %v606, %v657
  %v664 = vxor.u32 %v660, 2147483648
  %v665 = vxor.u32 %v661, 2147483648
  %v666 = vxor.u32 %v662, 2147483648
  %v667 = vmul.f32 %v664, 1.442695
  %v668 = vpow.pop %v667
  %v669 = vmul.f32 %v665, 1.442695
  %v670 = vpow.pop %v669
  %v671 = vmul.f32 %v666, 1.442695
  %v672 = vpow.pop %v671
  %v673 = vadd.f32 %v668, 1.0
  %v674 = vadd.f32 %v670, 1.0
  %v675 = vadd.f32 %v672, 1.0
  %v676 = vrcp.pop %v673
  %v677 = vmul.f32 %v673, %v676
  %v678 = vsub.f32 1.0, %v677
  %v679 = vmul.f32 %v676, %v678
  %v680 = vadd.f32 %v676, %v679
  %vm681 = vweird.f32 %v673
  %vm682 = vweird.f32 %v676
  %vm683 = vmor %vm681, %vm682
  %v684 = vsel %vm683, %v676, %v680
  %v685 = vand.u32 2147483647, %v673
  %vm686 = vcmp.eq.f32.partialorder %v685, 8.507059e+37
  %v687 = vand.u32 %v673, 2147483648
  %v688 = vor.u32 1.1754944e-38, %v687
  %v689 = vsel %vm686, %v688, %v684
  %v690 = vmul.f32 1.0, %v689
  %v691 = vrcp.pop %v674
  %v692 = vmul.f32 %v674, %v691
  %v693 = vsub.f32 1.0, %v692
  %v694 = vmul.f32 %v691, %v693
  %v695 = vadd.f32 %v691, %v694
  %vm696 = vweird.f32 %v674
  %vm697 = vweird.f32 %v691
  %vm698 = vmor %vm696, %vm697
  %v699 = vsel %vm698, %v691, %v695
  %v700 = vand.u32 2147483647, %v674
  %vm701 = vcmp.eq.f32.partialorder %v700, 8.507059e+37
  %v702 = vand.u32 %v674, 2147483648
  %v703 = vor.u32 1.1754944e-38, %v702
  %v704 = vsel %vm701, %v703, %v699
  %v705 = vmul.f32 1.0, %v704
  %v706 = vrcp.pop %v675
  %v707 = vmul.f32 %v675, %v706
  %v708 = vsub.f32 1.0, %v707
  %v709 = vmul.f32 %v706, %v708
  %v710 = vadd.f32 %v706, %v709
  %vm711 = vweird.f32 %v675
  %vm712 = vweird.f32 %v706
  %vm713 = vmor %vm711, %vm712
  %v714 = vsel %vm713, %v706, %v710
  %v715 = vand.u32 2147483647, %v675
  %vm716 = vcmp.eq.f32.partialorder %v715, 8.507059e+37
  %v717 = vand.u32 %v675, 2147483648
  %v718 = vor.u32 1.1754944e-38, %v717
  %v719 = vsel %vm716, %v718, %v714
  %v720 = vmul.f32 1.0, %v719
  %v721 = vtanh.pop %v663
  %v722 = vmul.f32 %v705, %v597
  %v723 = vmul.f32 %v690, %v721
  %v724 = vadd.f32 %v722, %v723
  %v725 = vtanh.pop %v724
  %v726 = vmul.f32 %v720, %v725
  %s727 = smul.u32 2, 4
  %s728 = smul.addr %s727, 8
  %s729 = scalar_lea.vmem [#allocation2], %s728
  %v730 = vld [vmem:[%s729] sm:$0xff]
  %v731 = vld [vmem:[%s729 + $0x8] sm:$0xff]
  %v732 = vld [vmem:[%s729 + $0x10] sm:$0xff]
  %v733 = vld [vmem:[%s729 + $0x18] sm:$0xff]
  %v734 = vpack.c.bf16 %v726, %v726
  %735 = vmatpush.bf16.msra.mxu0 %v445
  %736 = vmatpush.bf16.msra.mxu0 %v441
  %737 = vmatpush.bf16.msra.mxu0 %v437
  %738 = vmatpush.bf16.msra.mxu0 %v433
  %739 = vmatpush.bf16.msra.mxu0 %v429
  %740 = vmatpush.bf16.msra.mxu0 %v425
  %741 = vmatpush.bf16.msra.mxu0 %v421
  %742 = vmatpush.bf16.msra.mxu0 %v417
  %743 = vmatmul.bf16.gmra.mxu0 %v734
  %v744 = vpop.f32.mrf.mxu0
  %v745 = vadd.f32 0.0, %v744
  %v746 = vpop.f32.mrf.mxu0
  %747 = vdwg.mxu0
  %748 = vmatpush.bf16.msra.mxu0 %v446
  %749 = vmatpush.bf16.msra.mxu0 %v442
  %750 = vmatpush.bf16.msra.mxu0 %v438
  %751 = vmatpush.bf16.msra.mxu0 %v434
  %752 = vmatpush.bf16.msra.mxu0 %v430
  %753 = vmatpush.bf16.msra.mxu0 %v426
  %754 = vmatpush.bf16.msra.mxu0 %v422
  %755 = vmatpush.bf16.msra.mxu0 %v418
  %756 = vmatmul.bf16.gmra.mxu0 %v734
  %v757 = vpop.f32.mrf.mxu0
  %v758 = vadd.f32 0.0, %v757
  %v759 = vpop.f32.mrf.mxu0
  %760 = vdwg.mxu0
  %761 = vmatpush.bf16.msra.mxu0 %v447
  %762 = vmatpush.bf16.msra.mxu0 %v443
  %763 = vmatpush.bf16.msra.mxu0 %v439
  %764 = vmatpush.bf16.msra.mxu0 %v435
  %765 = vmatpush.bf16.msra.mxu0 %v431
  %766 = vmatpush.bf16.msra.mxu0 %v427
  %767 = vmatpush.bf16.msra.mxu0 %v423
  %768 = vmatpush.bf16.msra.mxu0 %v419
  %769 = vmatmul.bf16.gmra.mxu0 %v734
  %v770 = vpop.f32.mrf.mxu0
  %v771 = vadd.f32 0.0, %v770
  %v772 = vpop.f32.mrf.mxu0
  %773 = vdwg.mxu0
  %774 = vmatpush.bf16.msra.mxu0 %v448
  %775 = vmatpush.bf16.msra.mxu0 %v444
  %776 = vmatpush.bf16.msra.mxu0 %v440
  %777 = vmatpush.bf16.msra.mxu0 %v436
  %778 = vmatpush.bf16.msra.mxu0 %v432
  %779 = vmatpush.bf16.msra.mxu0 %v428
  %780 = vmatpush.bf16.msra.mxu0 %v424
  %781 = vmatpush.bf16.msra.mxu0 %v420
  %782 = vmatmul.bf16.gmra.mxu0 %v734
  %v783 = vpop.f32.mrf.mxu0
  %v784 = vadd.f32 0.0, %v783
  %v785 = vpop.f32.mrf.mxu0
  %786 = vdwg.mxu0
  %v787 = vadd.f32 %v730, %v745
  %v788 = vadd.f32 %v731, %v758
  %v789 = vadd.f32 %v732, %v771
  %v790 = vadd.f32 %v733, %v784
  %v791 = vxor.u32 %v787, 2147483648
  %v792 = vxor.u32 %v788, 2147483648
  %v793 = vxor.u32 %v789, 2147483648
  %v794 = vmul.f32 %v791, 1.442695
  %v795 = vpow.pop %v794
  %v796 = vmul.f32 %v792, 1.442695
  %v797 = vpow.pop %v796
  %v798 = vmul.f32 %v793, 1.442695
  %v799 = vpow.pop %v798
  %v800 = vadd.f32 %v795, 1.0
  %v801 = vadd.f32 %v797, 1.0
  %v802 = vadd.f32 %v799, 1.0
  %v803 = vrcp.pop %v800
  %v804 = vmul.f32 %v800, %v803
  %v805 = vsub.f32 1.0, %v804
  %v806 = vmul.f32 %v803, %v805
  %v807 = vadd.f32 %v803, %v806
  %vm808 = vweird.f32 %v800
  %vm809 = vweird.f32 %v803
  %vm810 = vmor %vm808, %vm809
  %v811 = vsel %vm810, %v803, %v807
  %v812 = vand.u32 2147483647, %v800
  %vm813 = vcmp.eq.f32.partialorder %v812, 8.507059e+37
  %v814 = vand.u32 %v800, 2147483648
  %v815 = vor.u32 1.1754944e-38, %v814
  %v816 = vsel %vm813, %v815, %v811
  %v817 = vmul.f32 1.0, %v816
  %v818 = vrcp.pop %v801
  %v819 = vmul.f32 %v801, %v818
  %v820 = vsub.f32 1.0, %v819
  %v821 = vmul.f32 %v818, %v820
  %v822 = vadd.f32 %v818, %v821
  %vm823 = vweird.f32 %v801
  %vm824 = vweird.f32 %v818
  %vm825 = vmor %vm823, %vm824
  %v826 = vsel %vm825, %v818, %v822
  %v827 = vand.u32 2147483647, %v801
  %vm828 = vcmp.eq.f32.partialorder %v827, 8.507059e+37
  %v829 = vand.u32 %v801, 2147483648
  %v830 = vor.u32 1.1754944e-38, %v829
  %v831 = vsel %vm828, %v830, %v826
  %v832 = vmul.f32 1.0, %v831
  %v833 = vrcp.pop %v802
  %v834 = vmul.f32 %v802, %v833
  %v835 = vsub.f32 1.0, %v834
  %v836 = vmul.f32 %v833, %v835
  %v837 = vadd.f32 %v833, %v836
  %vm838 = vweird.f32 %v802
  %vm839 = vweird.f32 %v833
  %vm840 = vmor %vm838, %vm839
  %v841 = vsel %vm840, %v833, %v837
  %v842 = vand.u32 2147483647, %v802
  %vm843 = vcmp.eq.f32.partialorder %v842, 8.507059e+37
  %v844 = vand.u32 %v802, 2147483648
  %v845 = vor.u32 1.1754944e-38, %v844
  %v846 = vsel %vm843, %v845, %v841
  %v847 = vmul.f32 1.0, %v846
  %v848 = vtanh.pop %v790
  %v849 = vmul.f32 %v832, %v724
  %v850 = vmul.f32 %v817, %v848
  %v851 = vadd.f32 %v849, %v850
  %v852 = vtanh.pop %v851
  %v853 = vmul.f32 %v847, %v852
  %s854 = smul.u32 3, 4
  %s855 = smul.addr %s854, 8
  %s856 = scalar_lea.vmem [#allocation2], %s855
  %v857 = vld [vmem:[%s856] sm:$0xff]
  %v858 = vld [vmem:[%s856 + $0x8] sm:$0xff]
  %v859 = vld [vmem:[%s856 + $0x10] sm:$0xff]
  %v860 = vld [vmem:[%s856 + $0x18] sm:$0xff]
  %v861 = vpack.c.bf16 %v853, %v853
  %862 = vmatpush.bf16.msra.mxu0 %v445
  %863 = vmatpush.bf16.msra.mxu0 %v441
  %864 = vmatpush.bf16.msra.mxu0 %v437
  %865 = vmatpush.bf16.msra.mxu0 %v433
  %866 = vmatpush.bf16.msra.mxu0 %v429
  %867 = vmatpush.bf16.msra.mxu0 %v425
  %868 = vmatpush.bf16.msra.mxu0 %v421
  %869 = vmatpush.bf16.msra.mxu0 %v417
  %870 = vmatmul.bf16.gmra.mxu0 %v861
  %v871 = vpop.f32.mrf.mxu0
  %v872 = vadd.f32 0.0, %v871
  %v873 = vpop.f32.mrf.mxu0
  %874 = vdwg.mxu0
  %875 = vmatpush.bf16.msra.mxu0 %v446
  %876 = vmatpush.bf16.msra.mxu0 %v442
  %877 = vmatpush.bf16.msra.mxu0 %v438
  %878 = vmatpush.bf16.msra.mxu0 %v434
  %879 = vmatpush.bf16.msra.mxu0 %v430
  %880 = vmatpush.bf16.msra.mxu0 %v426
  %881 = vmatpush.bf16.msra.mxu0 %v422
  %882 = vmatpush.bf16.msra.mxu0 %v418
  %883 = vmatmul.bf16.gmra.mxu0 %v861
  %v884 = vpop.f32.mrf.mxu0
  %v885 = vadd.f32 0.0, %v884
  %v886 = vpop.f32.mrf.mxu0
  %887 = vdwg.mxu0
  %888 = vmatpush.bf16.msra.mxu0 %v447
  %889 = vmatpush.bf16.msra.mxu0 %v443
  %890 = vmatpush.bf16.msra.mxu0 %v439
  %891 = vmatpush.bf16.msra.mxu0 %v435
  %892 = vmatpush.bf16.msra.mxu0 %v431
  %893 = vmatpush.bf16.msra.mxu0 %v427
  %894 = vmatpush.bf16.msra.mxu0 %v423
  %895 = vmatpush.bf16.msra.mxu0 %v419
  %896 = vmatmul.bf16.gmra.mxu0 %v861
  %v897 = vpop.f32.mrf.mxu0
  %v898 = vadd.f32 0.0, %v897
  %v899 = vpop.f32.mrf.mxu0
  %900 = vdwg.mxu0
  %901 = vmatpush.bf16.msra.mxu0 %v448
  %902 = vmatpush.bf16.msra.mxu0 %v444
  %903 = vmatpush.bf16.msra.mxu0 %v440
  %904 = vmatpush.bf16.msra.mxu0 %v436
  %905 = vmatpush.bf16.msra.mxu0 %v432
  %906 = vmatpush.bf16.msra.mxu0 %v428
  %907 = vmatpush.bf16.msra.mxu0 %v424
  %908 = vmatpush.bf16.msra.mxu0 %v420
  %909 = vmatmul.bf16.gmra.mxu0 %v861
  %v910 = vpop.f32.mrf.mxu0
  %v911 = vadd.f32 0.0, %v910
  %v912 = vpop.f32.mrf.mxu0
  %913 = vdwg.mxu0
  %v914 = vadd.f32 %v857, %v872
  %v915 = vadd.f32 %v858, %v885
  %v916 = vadd.f32 %v859, %v898
  %v917 = vadd.f32 %v860, %v911
  %v918 = vxor.u32 %v914, 2147483648
  %v919 = vxor.u32 %v915, 2147483648
  %v920 = vxor.u32 %v916, 2147483648
  %v921 = vmul.f32 %v918, 1.442695
  %v922 = vpow.pop %v921
  %v923 = vmul.f32 %v919, 1.442695
  %v924 = vpow.pop %v923
  %v925 = vmul.f32 %v920, 1.442695
  %v926 = vpow.pop %v925
  %v927 = vadd.f32 %v922, 1.0
  %v928 = vadd.f32 %v924, 1.0
  %v929 = vadd.f32 %v926, 1.0
  %v930 = vrcp.pop %v927
  %v931 = vmul.f32 %v927, %v930
  %v932 = vsub.f32 1.0, %v931
  %v933 = vmul.f32 %v930, %v932
  %v934 = vadd.f32 %v930, %v933
  %vm935 = vweird.f32 %v927
  %vm936 = vweird.f32 %v930
  %vm937 = vmor %vm935, %vm936
  %v938 = vsel %vm937, %v930, %v934
  %v939 = vand.u32 2147483647, %v927
  %vm940 = vcmp.eq.f32.partialorder %v939, 8.507059e+37
  %v941 = vand.u32 %v927, 2147483648
  %v942 = vor.u32 1.1754944e-38, %v941
  %v943 = vsel %vm940, %v942, %v938
  %v944 = vmul.f32 1.0, %v943
  %v945 = vrcp.pop %v928
  %v946 = vmul.f32 %v928, %v945
  %v947 = vsub.f32 1.0, %v946
  %v948 = vmul.f32 %v945, %v947
  %v949 = vadd.f32 %v945, %v948
  %vm950 = vweird.f32 %v928
  %vm951 = vweird.f32 %v945
  %vm952 = vmor %vm950, %vm951
  %v953 = vsel %vm952, %v945, %v949
  %v954 = vand.u32 2147483647, %v928
  %vm955 = vcmp.eq.f32.partialorder %v954, 8.507059e+37
  %v956 = vand.u32 %v928, 2147483648
  %v957 = vor.u32 1.1754944e-38, %v956
  %v958 = vsel %vm955, %v957, %v953
  %v959 = vmul.f32 1.0, %v958
  %v960 = vrcp.pop %v929
  %v961 = vmul.f32 %v929, %v960
  %v962 = vsub.f32 1.0, %v961
  %v963 = vmul.f32 %v960, %v962
  %v964 = vadd.f32 %v960, %v963
  %vm965 = vweird.f32 %v929
  %vm966 = vweird.f32 %v960
  %vm967 = vmor %vm965, %vm966
  %v968 = vsel %vm967, %v960, %v964
  %v969 = vand.u32 2147483647, %v929
  %vm970 = vcmp.eq.f32.partialorder %v969, 8.507059e+37
  %v971 = vand.u32 %v929, 2147483648
  %v972 = vor.u32 1.1754944e-38, %v971
  %v973 = vsel %vm970, %v972, %v968
  %v974 = vmul.f32 1.0, %v973
  %v975 = vtanh.pop %v917
  %v976 = vmul.f32 %v959, %v851
  %v977 = vmul.f32 %v944, %v975
  %v978 = vadd.f32 %v976, %v977
  %v979 = vtanh.pop %v978
  %v980 = vmul.f32 %v974, %v979
  %s981 = smul.u32 4, 4
  %s982 = smul.addr %s981, 8
  %s983 = scalar_lea.vmem [#allocation2], %s982
  %v984 = vld [vmem:[%s983] sm:$0xff]
  %v985 = vld [vmem:[%s983 + $0x8] sm:$0xff]
  %v986 = vld [vmem:[%s983 + $0x10] sm:$0xff]
  %v987 = vld [vmem:[%s983 + $0x18] sm:$0xff]
  %v988 = vpack.c.bf16 %v980, %v980
  %989 = vmatpush.bf16.msra.mxu0 %v445
  %990 = vmatpush.bf16.msra.mxu0 %v441
  %991 = vmatpush.bf16.msra.mxu0 %v437
  %992 = vmatpush.bf16.msra.mxu0 %v433
  %993 = vmatpush.bf16.msra.mxu0 %v429
  %994 = vmatpush.bf16.msra.mxu0 %v425
  %995 = vmatpush.bf16.msra.mxu0 %v421
  %996 = vmatpush.bf16.msra.mxu0 %v417
  %997 = vmatmul.bf16.gmra.mxu0 %v988
  %v998 = vpop.f32.mrf.mxu0
  %v999 = vadd.f32 0.0, %v998
  %v1000 = vpop.f32.mrf.mxu0
  %1001 = vdwg.mxu0
  %1002 = vmatpush.bf16.msra.mxu0 %v446
  %1003 = vmatpush.bf16.msra.mxu0 %v442
  %1004 = vmatpush.bf16.msra.mxu0 %v438
  %1005 = vmatpush.bf16.msra.mxu0 %v434
  %1006 = vmatpush.bf16.msra.mxu0 %v430
  %1007 = vmatpush.bf16.msra.mxu0 %v426
  %1008 = vmatpush.bf16.msra.mxu0 %v422
  %1009 = vmatpush.bf16.msra.mxu0 %v418
  %1010 = vmatmul.bf16.gmra.mxu0 %v988
  %v1011 = vpop.f32.mrf.mxu0
  %v1012 = vadd.f32 0.0, %v1011
  %v1013 = vpop.f32.mrf.mxu0
  %1014 = vdwg.mxu0
  %1015 = vmatpush.bf16.msra.mxu0 %v447
  %1016 = vmatpush.bf16.msra.mxu0 %v443
  %1017 = vmatpush.bf16.msra.mxu0 %v439
  %1018 = vmatpush.bf16.msra.mxu0 %v435
  %1019 = vmatpush.bf16.msra.mxu0 %v431
  %1020 = vmatpush.bf16.msra.mxu0 %v427
  %1021 = vmatpush.bf16.msra.mxu0 %v423
  %1022 = vmatpush.bf16.msra.mxu0 %v419
  %1023 = vmatmul.bf16.gmra.mxu0 %v988
  %v1024 = vpop.f32.mrf.mxu0
  %v1025 = vadd.f32 0.0, %v1024
  %v1026 = vpop.f32.mrf.mxu0
  %1027 = vdwg.mxu0
  %1028 = vmatpush.bf16.msra.mxu0 %v448
  %1029 = vmatpush.bf16.msra.mxu0 %v444
  %1030 = vmatpush.bf16.msra.mxu0 %v440
  %1031 = vmatpush.bf16.msra.mxu0 %v436
  %1032 = vmatpush.bf16.msra.mxu0 %v432
  %1033 = vmatpush.bf16.msra.mxu0 %v428
  %1034 = vmatpush.bf16.msra.mxu0 %v424
  %1035 = vmatpush.bf16.msra.mxu0 %v420
  %1036 = vmatmul.bf16.gmra.mxu0 %v988
  %v1037 = vpop.f32.mrf.mxu0
  %v1038 = vadd.f32 0.0, %v1037
  %v1039 = vpop.f32.mrf.mxu0
  %1040 = vdwg.mxu0
  %v1041 = vadd.f32 %v984, %v999
  %v1042 = vadd.f32 %v985, %v1012
  %v1043 = vadd.f32 %v986, %v1025
  %v1044 = vadd.f32 %v987, %v1038
  %v1045 = vxor.u32 %v1041, 2147483648
  %v1046 = vxor.u32 %v1042, 2147483648
  %v1047 = vxor.u32 %v1043, 2147483648
  %v1048 = vmul.f32 %v1045, 1.442695
  %v1049 = vpow.pop %v1048
  %v1050 = vmul.f32 %v1046, 1.442695
  %v1051 = vpow.pop %v1050
  %v1052 = vmul.f32 %v1047, 1.442695
  %v1053 = vpow.pop %v1052
  %v1054 = vadd.f32 %v1049, 1.0
  %v1055 = vadd.f32 %v1051, 1.0
  %v1056 = vadd.f32 %v1053, 1.0
  %v1057 = vrcp.pop %v1054
  %v1058 = vmul.f32 %v1054, %v1057
  %v1059 = vsub.f32 1.0, %v1058
  %v1060 = vmul.f32 %v1057, %v1059
  %v1061 = vadd.f32 %v1057, %v1060
  %vm1062 = vweird.f32 %v1054
  %vm1063 = vweird.f32 %v1057
  %vm1064 = vmor %vm1062, %vm1063
  %v1065 = vsel %vm1064, %v1057, %v1061
  %v1066 = vand.u32 2147483647, %v1054
  %vm1067 = vcmp.eq.f32.partialorder %v1066, 8.507059e+37
  %v1068 = vand.u32 %v1054, 2147483648
  %v1069 = vor.u32 1.1754944e-38, %v1068
  %v1070 = vsel %vm1067, %v1069, %v1065
  %v1071 = vmul.f32 1.0, %v1070
  %v1072 = vrcp.pop %v1055
  %v1073 = vmul.f32 %v1055, %v1072
  %v1074 = vsub.f32 1.0, %v1073
  %v1075 = vmul.f32 %v1072, %v1074
  %v1076 = vadd.f32 %v1072, %v1075
  %vm1077 = vweird.f32 %v1055
  %vm1078 = vweird.f32 %v1072
  %vm1079 = vmor %vm1077, %vm1078
  %v1080 = vsel %vm1079, %v1072, %v1076
  %v1081 = vand.u32 2147483647, %v1055
  %vm1082 = vcmp.eq.f32.partialorder %v1081, 8.507059e+37
  %v1083 = vand.u32 %v1055, 2147483648
  %v1084 = vor.u32 1.1754944e-38, %v1083
  %v1085 = vsel %vm1082, %v1084, %v1080
  %v1086 = vmul.f32 1.0, %v1085
  %v1087 = vrcp.pop %v1056
  %v1088 = vmul.f32 %v1056, %v1087
  %v1089 = vsub.f32 1.0, %v1088
  %v1090 = vmul.f32 %v1087, %v1089
  %v1091 = vadd.f32 %v1087, %v1090
  %vm1092 = vweird.f32 %v1056
  %vm1093 = vweird.f32 %v1087
  %vm1094 = vmor %vm1092, %vm1093
  %v1095 = vsel %vm1094, %v1087, %v1091
  %v1096 = vand.u32 2147483647, %v1056
  %vm1097 = vcmp.eq.f32.partialorder %v1096, 8.507059e+37
  %v1098 = vand.u32 %v1056, 2147483648
  %v1099 = vor.u32 1.1754944e-38, %v1098
  %v1100 = vsel %vm1097, %v1099, %v1095
  %v1101 = vmul.f32 1.0, %v1100
  %v1102 = vtanh.pop %v1044
  %v1103 = vmul.f32 %v1086, %v978
  %v1104 = vmul.f32 %v1071, %v1102
  %v1105 = vadd.f32 %v1103, %v1104
  %v1106 = vtanh.pop %v1105
  %v1107 = vmul.f32 %v1101, %v1106
  %s1108 = smul.u32 5, 4
  %s1109 = smul.addr %s1108, 8
  %s1110 = scalar_lea.vmem [#allocation2], %s1109
  %v1111 = vld [vmem:[%s1110] sm:$0xff]
  %v1112 = vld [vmem:[%s1110 + $0x8] sm:$0xff]
  %v1113 = vld [vmem:[%s1110 + $0x10] sm:$0xff]
  %v1114 = vld [vmem:[%s1110 + $0x18] sm:$0xff]
  %v1115 = vpack.c.bf16 %v1107, %v1107
  %1116 = vmatpush.bf16.msra.mxu0 %v445
  %1117 = vmatpush.bf16.msra.mxu0 %v441
  %1118 = vmatpush.bf16.msra.mxu0 %v437
  %1119 = vmatpush.bf16.msra.mxu0 %v433
  %1120 = vmatpush.bf16.msra.mxu0 %v429
  %1121 = vmatpush.bf16.msra.mxu0 %v425
  %1122 = vmatpush.bf16.msra.mxu0 %v421
  %1123 = vmatpush.bf16.msra.mxu0 %v417
  %1124 = vmatmul.bf16.gmra.mxu0 %v1115
  %v1125 = vpop.f32.mrf.mxu0
  %v1126 = vadd.f32 0.0, %v1125
  %v1127 = vpop.f32.mrf.mxu0
  %1128 = vdwg.mxu0
  %1129 = vmatpush.bf16.msra.mxu0 %v446
  %1130 = vmatpush.bf16.msra.mxu0 %v442
  %1131 = vmatpush.bf16.msra.mxu0 %v438
  %1132 = vmatpush.bf16.msra.mxu0 %v434
  %1133 = vmatpush.bf16.msra.mxu0 %v430
  %1134 = vmatpush.bf16.msra.mxu0 %v426
  %1135 = vmatpush.bf16.msra.mxu0 %v422
  %1136 = vmatpush.bf16.msra.mxu0 %v418
  %1137 = vmatmul.bf16.gmra.mxu0 %v1115
  %v1138 = vpop.f32.mrf.mxu0
  %v1139 = vadd.f32 0.0, %v1138
  %v1140 = vpop.f32.mrf.mxu0
  %1141 = vdwg.mxu0
  %1142 = vmatpush.bf16.msra.mxu0 %v447
  %1143 = vmatpush.bf16.msra.mxu0 %v443
  %1144 = vmatpush.bf16.msra.mxu0 %v439
  %1145 = vmatpush.bf16.msra.mxu0 %v435
  %1146 = vmatpush.bf16.msra.mxu0 %v431
  %1147 = vmatpush.bf16.msra.mxu0 %v427
  %1148 = vmatpush.bf16.msra.mxu0 %v423
  %1149 = vmatpush.bf16.msra.mxu0 %v419
  %1150 = vmatmul.bf16.gmra.mxu0 %v1115
  %v1151 = vpop.f32.mrf.mxu0
  %v1152 = vadd.f32 0.0, %v1151
  %v1153 = vpop.f32.mrf.mxu0
  %1154 = vdwg.mxu0
  %1155 = vmatpush.bf16.msra.mxu0 %v448
  %1156 = vmatpush.bf16.msra.mxu0 %v444
  %1157 = vmatpush.bf16.msra.mxu0 %v440
  %1158 = vmatpush.bf16.msra.mxu0 %v436
  %1159 = vmatpush.bf16.msra.mxu0 %v432
  %1160 = vmatpush.bf16.msra.mxu0 %v428
  %1161 = vmatpush.bf16.msra.mxu0 %v424
  %1162 = vmatpush.bf16.msra.mxu0 %v420
  %1163 = vmatmul.bf16.gmra.mxu0 %v1115
  %v1164 = vpop.f32.mrf.mxu0
  %v1165 = vadd.f32 0.0, %v1164
  %v1166 = vpop.f32.mrf.mxu0
  %1167 = vdwg.mxu0
  %v1168 = vadd.f32 %v1111, %v1126
  %v1169 = vadd.f32 %v1112, %v1139
  %v1170 = vadd.f32 %v1113, %v1152
  %v1171 = vadd.f32 %v1114, %v1165
  %v1172 = vxor.u32 %v1168, 2147483648
  %v1173 = vxor.u32 %v1169, 2147483648
  %v1174 = vxor.u32 %v1170, 2147483648
  %v1175 = vmul.f32 %v1172, 1.442695
  %v1176 = vpow.pop %v1175
  %v1177 = vmul.f32 %v1173, 1.442695
  %v1178 = vpow.pop %v1177
  %v1179 = vmul.f32 %v1174, 1.442695
  %v1180 = vpow.pop %v1179
  %v1181 = vadd.f32 %v1176, 1.0
  %v1182 = vadd.f32 %v1178, 1.0
  %v1183 = vadd.f32 %v1180, 1.0
  %v1184 = vrcp.pop %v1181
  %v1185 = vmul.f32 %v1181, %v1184
  %v1186 = vsub.f32 1.0, %v1185
  %v1187 = vmul.f32 %v1184, %v1186
  %v1188 = vadd.f32 %v1184, %v1187
  %vm1189 = vweird.f32 %v1181
  %vm1190 = vweird.f32 %v1184
  %vm1191 = vmor %vm1189, %vm1190
  %v1192 = vsel %vm1191, %v1184, %v1188
  %v1193 = vand.u32 2147483647, %v1181
  %vm1194 = vcmp.eq.f32.partialorder %v1193, 8.507059e+37
  %v1195 = vand.u32 %v1181, 2147483648
  %v1196 = vor.u32 1.1754944e-38, %v1195
  %v1197 = vsel %vm1194, %v1196, %v1192
  %v1198 = vmul.f32 1.0, %v1197
  %v1199 = vrcp.pop %v1182
  %v1200 = vmul.f32 %v1182, %v1199
  %v1201 = vsub.f32 1.0, %v1200
  %v1202 = vmul.f32 %v1199, %v1201
  %v1203 = vadd.f32 %v1199, %v1202
  %vm1204 = vweird.f32 %v1182
  %vm1205 = vweird.f32 %v1199
  %vm1206 = vmor %vm1204, %vm1205
  %v1207 = vsel %vm1206, %v1199, %v1203
  %v1208 = vand.u32 2147483647, %v1182
  %vm1209 = vcmp.eq.f32.partialorder %v1208, 8.507059e+37
  %v1210 = vand.u32 %v1182, 2147483648
  %v1211 = vor.u32 1.1754944e-38, %v1210
  %v1212 = vsel %vm1209, %v1211, %v1207
  %v1213 = vmul.f32 1.0, %v1212
  %v1214 = vrcp.pop %v1183
  %v1215 = vmul.f32 %v1183, %v1214
  %v1216 = vsub.f32 1.0, %v1215
  %v1217 = vmul.f32 %v1214, %v1216
  %v1218 = vadd.f32 %v1214, %v1217
  %vm1219 = vweird.f32 %v1183
  %vm1220 = vweird.f32 %v1214
  %vm1221 = vmor %vm1219, %vm1220
  %v1222 = vsel %vm1221, %v1214, %v1218
  %v1223 = vand.u32 2147483647, %v1183
  %vm1224 = vcmp.eq.f32.partialorder %v1223, 8.507059e+37
  %v1225 = vand.u32 %v1183, 2147483648
  %v1226 = vor.u32 1.1754944e-38, %v1225
  %v1227 = vsel %vm1224, %v1226, %v1222
  %v1228 = vmul.f32 1.0, %v1227
  %v1229 = vtanh.pop %v1171
  %v1230 = vmul.f32 %v1213, %v1105
  %v1231 = vmul.f32 %v1198, %v1229
  %v1232 = vadd.f32 %v1230, %v1231
  %v1233 = vtanh.pop %v1232
  %v1234 = vmul.f32 %v1228, %v1233
  %s1235 = smul.u32 6, 4
  %s1236 = smul.addr %s1235, 8
  %s1237 = scalar_lea.vmem [#allocation2], %s1236
  %v1238 = vld [vmem:[%s1237] sm:$0xff]
  %v1239 = vld [vmem:[%s1237 + $0x8] sm:$0xff]
  %v1240 = vld [vmem:[%s1237 + $0x10] sm:$0xff]
  %v1241 = vld [vmem:[%s1237 + $0x18] sm:$0xff]
  %v1242 = vpack.c.bf16 %v1234, %v1234
  %1243 = vmatpush.bf16.msra.mxu0 %v445
  %1244 = vmatpush.bf16.msra.mxu0 %v441
  %1245 = vmatpush.bf16.msra.mxu0 %v437
  %1246 = vmatpush.bf16.msra.mxu0 %v433
  %1247 = vmatpush.bf16.msra.mxu0 %v429
  %1248 = vmatpush.bf16.msra.mxu0 %v425
  %1249 = vmatpush.bf16.msra.mxu0 %v421
  %1250 = vmatpush.bf16.msra.mxu0 %v417
  %1251 = vmatmul.bf16.gmra.mxu0 %v1242
  %v1252 = vpop.f32.mrf.mxu0
  %v1253 = vadd.f32 0.0, %v1252
  %v1254 = vpop.f32.mrf.mxu0
  %1255 = vdwg.mxu0
  %1256 = vmatpush.bf16.msra.mxu0 %v446
  %1257 = vmatpush.bf16.msra.mxu0 %v442
  %1258 = vmatpush.bf16.msra.mxu0 %v438
  %1259 = vmatpush.bf16.msra.mxu0 %v434
  %1260 = vmatpush.bf16.msra.mxu0 %v430
  %1261 = vmatpush.bf16.msra.mxu0 %v426
  %1262 = vmatpush.bf16.msra.mxu0 %v422
  %1263 = vmatpush.bf16.msra.mxu0 %v418
  %1264 = vmatmul.bf16.gmra.mxu0 %v1242
  %v1265 = vpop.f32.mrf.mxu0
  %v1266 = vadd.f32 0.0, %v1265
  %v1267 = vpop.f32.mrf.mxu0
  %1268 = vdwg.mxu0
  %1269 = vmatpush.bf16.msra.mxu0 %v447
  %1270 = vmatpush.bf16.msra.mxu0 %v443
  %1271 = vmatpush.bf16.msra.mxu0 %v439
  %1272 = vmatpush.bf16.msra.mxu0 %v435
  %1273 = vmatpush.bf16.msra.mxu0 %v431
  %1274 = vmatpush.bf16.msra.mxu0 %v427
  %1275 = vmatpush.bf16.msra.mxu0 %v423
  %1276 = vmatpush.bf16.msra.mxu0 %v419
  %1277 = vmatmul.bf16.gmra.mxu0 %v1242
  %v1278 = vpop.f32.mrf.mxu0
  %v1279 = vadd.f32 0.0, %v1278
  %v1280 = vpop.f32.mrf.mxu0
  %1281 = vdwg.mxu0
  %1282 = vmatpush.bf16.msra.mxu0 %v448
  %1283 = vmatpush.bf16.msra.mxu0 %v444
  %1284 = vmatpush.bf16.msra.mxu0 %v440
  %1285 = vmatpush.bf16.msra.mxu0 %v436
  %1286 = vmatpush.bf16.msra.mxu0 %v432
  %1287 = vmatpush.bf16.msra.mxu0 %v428
  %1288 = vmatpush.bf16.msra.mxu0 %v424
  %1289 = vmatpush.bf16.msra.mxu0 %v420
  %1290 = vmatmul.bf16.gmra.mxu0 %v1242
  %v1291 = vpop.f32.mrf.mxu0
  %v1292 = vadd.f32 0.0, %v1291
  %v1293 = vpop.f32.mrf.mxu0
  %1294 = vdwg.mxu0
  %v1295 = vadd.f32 %v1238, %v1253
  %v1296 = vadd.f32 %v1239, %v1266
  %v1297 = vadd.f32 %v1240, %v1279
  %v1298 = vadd.f32 %v1241, %v1292
  %v1299 = vxor.u32 %v1295, 2147483648
  %v1300 = vxor.u32 %v1296, 2147483648
  %v1301 = vxor.u32 %v1297, 2147483648
  %v1302 = vmul.f32 %v1299, 1.442695
  %v1303 = vpow.pop %v1302
  %v1304 = vmul.f32 %v1300, 1.442695
  %v1305 = vpow.pop %v1304
  %v1306 = vmul.f32 %v1301, 1.442695
  %v1307 = vpow.pop %v1306
  %v1308 = vadd.f32 %v1303, 1.0
  %v1309 = vadd.f32 %v1305, 1.0
  %v1310 = vadd.f32 %v1307, 1.0
  %v1311 = vrcp.pop %v1308
  %v1312 = vmul.f32 %v1308, %v1311
  %v1313 = vsub.f32 1.0, %v1312
  %v1314 = vmul.f32 %v1311, %v1313
  %v1315 = vadd.f32 %v1311, %v1314
  %vm1316 = vweird.f32 %v1308
  %vm1317 = vweird.f32 %v1311
  %vm1318 = vmor %vm1316, %vm1317
  %v1319 = vsel %vm1318, %v1311, %v1315
  %v1320 = vand.u32 2147483647, %v1308
  %vm1321 = vcmp.eq.f32.partialorder %v1320, 8.507059e+37
  %v1322 = vand.u32 %v1308, 2147483648
  %v1323 = vor.u32 1.1754944e-38, %v1322
  %v1324 = vsel %vm1321, %v1323, %v1319
  %v1325 = vmul.f32 1.0, %v1324
  %v1326 = vrcp.pop %v1309
  %v1327 = vmul.f32 %v1309, %v1326
  %v1328 = vsub.f32 1.0, %v1327
  %v1329 = vmul.f32 %v1326, %v1328
  %v1330 = vadd.f32 %v1326, %v1329
  %vm1331 = vweird.f32 %v1309
  %vm1332 = vweird.f32 %v1326
  %vm1333 = vmor %vm1331, %vm1332
  %v1334 = vsel %vm1333, %v1326, %v1330
  %v1335 = vand.u32 2147483647, %v1309
  %vm1336 = vcmp.eq.f32.partialorder %v1335, 8.507059e+37
  %v1337 = vand.u32 %v1309, 2147483648
  %v1338 = vor.u32 1.1754944e-38, %v1337
  %v1339 = vsel %vm1336, %v1338, %v1334
  %v1340 = vmul.f32 1.0, %v1339
  %v1341 = vrcp.pop %v1310
  %v1342 = vmul.f32 %v1310, %v1341
  %v1343 = vsub.f32 1.0, %v1342
  %v1344 = vmul.f32 %v1341, %v1343
  %v1345 = vadd.f32 %v1341, %v1344
  %vm1346 = vweird.f32 %v1310
  %vm1347 = vweird.f32 %v1341
  %vm1348 = vmor %vm1346, %vm1347
  %v1349 = vsel %vm1348, %v1341, %v1345
  %v1350 = vand.u32 2147483647, %v1310
  %vm1351 = vcmp.eq.f32.partialorder %v1350, 8.507059e+37
  %v1352 = vand.u32 %v1310, 2147483648
  %v1353 = vor.u32 1.1754944e-38, %v1352
  %v1354 = vsel %vm1351, %v1353, %v1349
  %v1355 = vmul.f32 1.0, %v1354
  %v1356 = vtanh.pop %v1298
  %v1357 = vmul.f32 %v1340, %v1232
  %v1358 = vmul.f32 %v1325, %v1356
  %v1359 = vadd.f32 %v1357, %v1358
  %v1360 = vtanh.pop %v1359
  %v1361 = vmul.f32 %v1355, %v1360
  %s1362 = smul.u32 7, 4
  %s1363 = smul.addr %s1362, 8
  %s1364 = scalar_lea.vmem [#allocation2], %s1363
  %v1365 = vld [vmem:[%s1364] sm:$0xff]
  %v1366 = vld [vmem:[%s1364 + $0x8] sm:$0xff]
  %v1367 = vld [vmem:[%s1364 + $0x10] sm:$0xff]
  %v1368 = vld [vmem:[%s1364 + $0x18] sm:$0xff]
  %v1369 = vpack.c.bf16 %v1361, %v1361
  %1370 = vmatpush.bf16.msra.mxu0 %v445
  %1371 = vmatpush.bf16.msra.mxu0 %v441
  %1372 = vmatpush.bf16.msra.mxu0 %v437
  %1373 = vmatpush.bf16.msra.mxu0 %v433
  %1374 = vmatpush.bf16.msra.mxu0 %v429
  %1375 = vmatpush.bf16.msra.mxu0 %v425
  %1376 = vmatpush.bf16.msra.mxu0 %v421
  %1377 = vmatpush.bf16.msra.mxu0 %v417
  %1378 = vmatmul.bf16.gmra.mxu0 %v1369
  %v1379 = vpop.f32.mrf.mxu0
  %v1380 = vadd.f32 0.0, %v1379
  %v1381 = vpop.f32.mrf.mxu0
  %1382 = vdwg.mxu0
  %1383 = vmatpush.bf16.msra.mxu0 %v446
  %1384 = vmatpush.bf16.msra.mxu0 %v442
  %1385 = vmatpush.bf16.msra.mxu0 %v438
  %1386 = vmatpush.bf16.msra.mxu0 %v434
  %1387 = vmatpush.bf16.msra.mxu0 %v430
  %1388 = vmatpush.bf16.msra.mxu0 %v426
  %1389 = vmatpush.bf16.msra.mxu0 %v422
  %1390 = vmatpush.bf16.msra.mxu0 %v418
  %1391 = vmatmul.bf16.gmra.mxu0 %v1369
  %v1392 = vpop.f32.mrf.mxu0
  %v1393 = vadd.f32 0.0, %v1392
  %v1394 = vpop.f32.mrf.mxu0
  %1395 = vdwg.mxu0
  %1396 = vmatpush.bf16.msra.mxu0 %v447
  %1397 = vmatpush.bf16.msra.mxu0 %v443
  %1398 = vmatpush.bf16.msra.mxu0 %v439
  %1399 = vmatpush.bf16.msra.mxu0 %v435
  %1400 = vmatpush.bf16.msra.mxu0 %v431
  %1401 = vmatpush.bf16.msra.mxu0 %v427
  %1402 = vmatpush.bf16.msra.mxu0 %v423
  %1403 = vmatpush.bf16.msra.mxu0 %v419
  %1404 = vmatmul.bf16.gmra.mxu0 %v1369
  %v1405 = vpop.f32.mrf.mxu0
  %v1406 = vadd.f32 0.0, %v1405
  %v1407 = vpop.f32.mrf.mxu0
  %1408 = vdwg.mxu0
  %1409 = vmatpush.bf16.msra.mxu0 %v448
  %1410 = vmatpush.bf16.msra.mxu0 %v444
  %1411 = vmatpush.bf16.msra.mxu0 %v440
  %1412 = vmatpush.bf16.msra.mxu0 %v436
  %1413 = vmatpush.bf16.msra.mxu0 %v432
  %1414 = vmatpush.bf16.msra.mxu0 %v428
  %1415 = vmatpush.bf16.msra.mxu0 %v424
  %1416 = vmatpush.bf16.msra.mxu0 %v420
  %1417 = vmatmul.bf16.gmra.mxu0 %v1369
  %v1418 = vpop.f32.mrf.mxu0
  %v1419 = vadd.f32 0.0, %v1418
  %v1420 = vpop.f32.mrf.mxu0
  %1421 = vdwg.mxu0
  %v1422 = vadd.f32 %v1365, %v1380
  %v1423 = vadd.f32 %v1366, %v1393
  %v1424 = vadd.f32 %v1367, %v1406
  %v1425 = vadd.f32 %v1368, %v1419
  %v1426 = vxor.u32 %v1422, 2147483648
  %v1427 = vxor.u32 %v1423, 2147483648
  %v1428 = vxor.u32 %v1424, 2147483648
  %v1429 = vmul.f32 %v1426, 1.442695
  %v1430 = vpow.pop %v1429
  %v1431 = vmul.f32 %v1427, 1.442695
  %v1432 = vpow.pop %v1431
  %v1433 = vmul.f32 %v1428, 1.442695
  %v1434 = vpow.pop %v1433
  %v1435 = vadd.f32 %v1430, 1.0
  %v1436 = vadd.f32 %v1432, 1.0
  %v1437 = vadd.f32 %v1434, 1.0
  %v1438 = vrcp.pop %v1435
  %v1439 = vmul.f32 %v1435, %v1438
  %v1440 = vsub.f32 1.0, %v1439
  %v1441 = vmul.f32 %v1438, %v1440
  %v1442 = vadd.f32 %v1438, %v1441
  %vm1443 = vweird.f32 %v1435
  %vm1444 = vweird.f32 %v1438
  %vm1445 = vmor %vm1443, %vm1444
  %v1446 = vsel %vm1445, %v1438, %v1442
  %v1447 = vand.u32 2147483647, %v1435
  %vm1448 = vcmp.eq.f32.partialorder %v1447, 8.507059e+37
  %v1449 = vand.u32 %v1435, 2147483648
  %v1450 = vor.u32 1.1754944e-38, %v1449
  %v1451 = vsel %vm1448, %v1450, %v1446
  %v1452 = vmul.f32 1.0, %v1451
  %v1453 = vrcp.pop %v1436
  %v1454 = vmul.f32 %v1436, %v1453
  %v1455 = vsub.f32 1.0, %v1454
  %v1456 = vmul.f32 %v1453, %v1455
  %v1457 = vadd.f32 %v1453, %v1456
  %vm1458 = vweird.f32 %v1436
  %vm1459 = vweird.f32 %v1453
  %vm1460 = vmor %vm1458, %vm1459
  %v1461 = vsel %vm1460, %v1453, %v1457
  %v1462 = vand.u32 2147483647, %v1436
  %vm1463 = vcmp.eq.f32.partialorder %v1462, 8.507059e+37
  %v1464 = vand.u32 %v1436, 2147483648
  %v1465 = vor.u32 1.1754944e-38, %v1464
  %v1466 = vsel %vm1463, %v1465, %v1461
  %v1467 = vmul.f32 1.0, %v1466
  %v1468 = vrcp.pop %v1437
  %v1469 = vmul.f32 %v1437, %v1468
  %v1470 = vsub.f32 1.0, %v1469
  %v1471 = vmul.f32 %v1468, %v1470
  %v1472 = vadd.f32 %v1468, %v1471
  %vm1473 = vweird.f32 %v1437
  %vm1474 = vweird.f32 %v1468
  %vm1475 = vmor %vm1473, %vm1474
  %v1476 = vsel %vm1475, %v1468, %v1472
  %v1477 = vand.u32 2147483647, %v1437
  %vm1478 = vcmp.eq.f32.partialorder %v1477, 8.507059e+37
  %v1479 = vand.u32 %v1437, 2147483648
  %v1480 = vor.u32 1.1754944e-38, %v1479
  %v1481 = vsel %vm1478, %v1480, %v1476
  %v1482 = vmul.f32 1.0, %v1481
  %v1483 = vtanh.pop %v1425
  %v1484 = vmul.f32 %v1467, %v1359
  %v1485 = vmul.f32 %v1452, %v1483
  %v1486 = vadd.f32 %v1484, %v1485
  %v1487 = vtanh.pop %v1486
  %v1488 = vmul.f32 %v1482, %v1487
  %1489 = vst [vmem:[#allocation3] sm:$0xff] %v1488
  %1490 = vst [vmem:[#allocation4] sm:$0xff] %v1486
  // Predicated region
  $region30: #{sequence_tagging_forward.1} parent=0 // pred_check
    %p1491 = pneg %p26
  $region31: #{sequence_tagging_forward.1} parent=0 // pred_check_branch
    %1493 = sbr.rel (%p1491) target = $region33
  $region32: #{sequence_tagging_forward.1} parent=0 // pred_region
    %v1494 = vld [vmem:[%s4] sm:$0x1]
    %v1496 = vperm.slane %v1494, 0
    %v1498 = vmul.f32 %v1488, %v1496
    %1499 = vadd.xlane.f32.xlu0 %v1498
    %v1500 = vpop.xlane.xlu0 %1499
    %v1501 = vld [vmem:[#allocation5] sm:$0x1]
    %v1503 = vperm.slane %v1501, 0
    %v1505 = vadd.f32 %v1500, %v1503
    %vm1506 = vcmask 7168
    %1507 = vst.msk [vmem:[%s6] sm:$0xff] %vm1506, %v1505
  $region33: #{sequence_tagging_forward.1} parent=0 // pred_fallthru
    _
  // Predicated region
  $region34: #{sequence_tagging_forward.1} parent=0 // pred_check
    _
  $region35: #{sequence_tagging_forward.1} parent=0 // pred_check_branch
    %1509 = sbr.rel (0) target = $region37
  $region36: #{sequence_tagging_forward.1} parent=0 // pred_region
    _
  $region37: #{sequence_tagging_forward.1} parent=0 // pred_fallthru
    _
  // Predicated region
  $region38: #{sequence_tagging_forward.1} parent=0 // pred_check
    _
  $region39: #{sequence_tagging_forward.1} parent=0 // pred_check_branch
    %1511 = sbr.rel (0) target = $region41
  $region40: #{sequence_tagging_forward.1} parent=0 // pred_region
    _
  $region41: #{sequence_tagging_forward.1} parent=0 // pred_fallthru
    _

</llo_original>
